<compile_context>
chip_gen: v7x
topology: tpu7x:2x2x1
jax: 0.10.0
libtpu: 0.0.40
codegen_flags: <defaults>
</compile_context>

<pallas_src>
import jax
import jax.numpy as jnp
from jax import lax
from jax.experimental import pallas as pl
from jax.experimental.pallas import tpu as pltpu


SUB_ROWS = 8      # query sub-tiles packed per output block (sublane dim)
MIN_TILE_B = 128  # lanes per sub-tile (multiple of 128)
MAX_TILE_B = 512


def _round_up(x, m):
    return ((x + m - 1) // m) * m


def _pick_tile_b(n_queries):
    # Wide lane tiles amortize the ~0.35us fixed per-grid-step overhead, but we
    # also want >=2 grid steps when the batch allows it so v7x's second
    # TensorCore gets work (the query grid axis is marked "parallel").
    per_step = pl.cdiv(max(int(n_queries), 1), 2)
    tile_b = _round_up(pl.cdiv(per_step, SUB_ROWS), MIN_TILE_B)
    return max(MIN_TILE_B, min(MAX_TILE_B, tile_b))


def entropy_block_kernel(params_ref, xq_ref, xtr_ref, kinv_aug_ref, out_ref,
                         mean8_ref, qf8_ref):
    sub, tile_b = out_ref.shape        # (8, TILE_B)
    m = xtr_ref.shape[0]               # training-set size M

    inv_ls2 = params_ref[0]            # 1 / lengthscale^2
    log_outscale = params_ref[1]       # log(outputscale)
    prior_var = params_ref[2]          # outputscale + noise
    thr = params_ref[3]                # decision threshold

    xq = xq_ref[...]                   # (D, 8*TILE_B)  queries on the lane axis
    xtr = xtr_ref[...]                 # (M, D)         training points (resident)
    kinv_aug = kinv_aug_ref[...]       # (M_aug, M)     [K^{-1}; alpha^T; 0-pad]

    # Rank-1 bias terms: every scalar factor (1/ls^2, 0.5, log outputscale) is
    # folded onto the small (M,1)/(1,B) vectors, never the (M,B) tiles.
    xtr_sq = jnp.sum(xtr * xtr, axis=-1, keepdims=True)           # (M, 1)
    row_bias = log_outscale - 0.5 * inv_ls2 * xtr_sq              # (M, 1)
    xq_sq = jnp.sum(xq * xq, axis=0, keepdims=True)               # (1, B)
    col_bias = (-0.5 * inv_ls2) * xq_sq                           # (1, B)

    # 1/ls^2 folded into the small (D, B) matmul operand, not the (M, B) result.
    cross = jnp.dot(xtr, xq * inv_ls2,
                    preferred_element_type=jnp.float32)           # (M, B)  MXU

    # k*(X_train, x_q) = outputscale * exp(-0.5 * ||.||^2 / ls^2)
    kstar = jnp.exp(cross + row_bias + col_bias)                  # (M, B)  EUP

    # Mean and quadratic form with ONE MXU matmul: kinv_aug stacks K^{-1}
    # (rows 0..M-1) and alpha^T = (K^{-1} y)^T (row M); remaining rows are 0.
    w_aug = jnp.dot(kinv_aug, kstar,
                    preferred_element_type=jnp.float32)           # (M_aug, B)
    mean_row = w_aug[m:m + 1, :]                                  # (1, B)  alpha^T k*
    qf_row = jnp.sum(kstar * w_aug[:m, :], axis=0, keepdims=True)  # (1, B)  k*^T K^-1 k*

    # Re-pack the sparse (1, 8*TILE_B) rows into dense (8, TILE_B) tiles so the
    # transcendental tail runs on fully-packed vregs and the output store is a
    # single unmasked lane-dense slab (no 8x replication / no masked stores).
    for s in range(sub):
        lo = s * tile_b
        mean8_ref[s:s + 1, :] = mean_row[:, lo:lo + tile_b]
        qf8_ref[s:s + 1, :] = qf_row[:, lo:lo + tile_b]
    mean = mean8_ref[...]                                         # (8, TILE_B)
    qf = qf8_ref[...]                                             # (8, TILE_B)

    # Predictive variance (likelihood adds noise); clamp for the degenerate
    # case where a query coincides with a training point (qf ~ prior_var).
    var = jnp.maximum(prior_var - qf, jnp.float32(1e-12))

    # p = 1 - Normal(mean, scale=var).cdf(thr).  The torch reference passes the
    # *variance* where the scale belongs; reproduced faithfully.
    sqrt2 = jnp.float32(1.4142135623730951)
    inv_scale = pl.reciprocal(var * sqrt2, approx=True)           # EUP vrcp
    z = (thr - mean) * inv_scale
    p = 1.0 - 0.5 * (1.0 + lax.erf(z))

    # Bernoulli entropy with the p == 0 / p == 1 guard of getBernuliEntropy
    # (implemented as a range check so it stays robust to FP jitter).
    tiny = jnp.float32(1e-38)
    one_m_p = 1.0 - p
    ent = (-p * jnp.log(jnp.maximum(p, tiny))
           - one_m_p * jnp.log(jnp.maximum(one_m_p, tiny)))
    ent = jnp.where(jnp.logical_or(p <= 0.0, p >= 1.0), jnp.float32(0.0), ent)

    out_ref[...] = ent


def make_kinv_aug(alpha, kinv):
    """Stack K^{-1} and alpha^T into one MXU operand, rows zero-padded to x8."""
    m = kinv.shape[0]
    m_aug = _round_up(m + 1, 8)
    kinv_aug = jnp.zeros((m_aug, m), jnp.float32)
    kinv_aug = kinv_aug.at[:m, :].set(kinv.astype(jnp.float32))
    kinv_aug = kinv_aug.at[m, :].set(jnp.reshape(alpha, (-1,)).astype(jnp.float32))
    return kinv_aug


def entropy_batch_pallas_t(xq_t, x_train, alpha, kinv,
                           lengthscale, outputscale, noise, threshold,
                           n_queries=None):
    """Entropy acquisition for queries already in lane-major (D, B) layout."""
    xq_t = jnp.asarray(xq_t, jnp.float32)
    D, B = xq_t.shape
    if n_queries is None:
        n_queries = B
    x_train = jnp.asarray(x_train, jnp.float32)
    M = x_train.shape[0]

    tile_b = _pick_tile_b(B)
    block_b = SUB_ROWS * tile_b
    G = pl.cdiv(B, block_b)
    B_pad = G * block_b
    if B_pad != B:
        # Padded lanes produce garbage entropies that are sliced off below; do
        # not reduce over the raw output slab.
        xq_t = jnp.zeros((D, B_pad), jnp.float32).at[:, :B].set(xq_t)

    kinv_aug = make_kinv_aug(alpha, kinv)
    M_aug = kinv_aug.shape[0]

    ls = jnp.float32(lengthscale)
    os_ = jnp.float32(outputscale)
    nz = jnp.float32(noise)
    params = jnp.stack([1.0 / (ls * ls), jnp.log(os_), os_ + nz,
                        jnp.float32(threshold)])

    # Advisory cost hint: two matmuls + elementwise/transcendental work.
    flops = (2 * B_pad * M * D          # cross matmul
             + 2 * B_pad * M_aug * M    # [K^{-1}; alpha^T] matmul
             + 8 * B_pad * M            # elementwise on the (M, B) tiles
             + 24 * B_pad)              # per-query tail
    transcendentals = B_pad * M + 4 * B_pad
    bytes_accessed = 4 * (D * B_pad + B_pad + M * D + M_aug * M + 4)

    out = pl.pallas_call(
        entropy_block_kernel,
        out_shape=jax.ShapeDtypeStruct((G * SUB_ROWS, tile_b), jnp.float32),
        grid_spec=pltpu.PrefetchScalarGridSpec(
            num_scalar_prefetch=0,
            grid=(G,),
            in_specs=[
                pl.BlockSpec(memory_space=pltpu.MemorySpace.SMEM),  # params (4,)
                pl.BlockSpec((D, block_b), lambda i: (0, i)),        # query tile
                pl.BlockSpec((M, D), lambda i: (0, 0)),              # X_train (resident)
                pl.BlockSpec((M_aug, M), lambda i: (0, 0)),          # [K^{-1}; alpha^T]
            ],
            out_specs=pl.BlockSpec((SUB_ROWS, tile_b), lambda i: (i, 0)),
            scratch_shapes=[
                pltpu.VMEM((SUB_ROWS, tile_b), jnp.float32),         # packed mean rows
                pltpu.VMEM((SUB_ROWS, tile_b), jnp.float32),         # packed qf rows
            ],
        ),
        compiler_params=pltpu.CompilerParams(
            dimension_semantics=("parallel",),   # both TensorCores on v7x
            vmem_limit_bytes=32 * 1024 * 1024,   # well above the ~5 MiB footprint
        ),
        cost_estimate=pl.CostEstimate(
            flops=flops,
            transcendentals=transcendentals,
            bytes_accessed=bytes_accessed,
        ),
        # TODO(synk): for large training sets (M >~ 1-2K) the resident f32
        # kinv_aug should be single-buffered (pipeline_mode=pl.Buffered(1)) or
        # cast to bf16, and/or tiled over a reduction grid axis with an f32
        # accumulator, to stay inside v7x's 64 MiB VMEM.
    )(params, xq_t, x_train, kinv_aug)

    # Row-major flattening of (G*8, TILE_B) is exactly query order.
    return out.reshape(-1)[:n_queries]


def entropy_batch_pallas(xq, x_train, alpha, kinv,
                         lengthscale, outputscale, noise, threshold):
    """Entropy acquisition for a (B, D) batch of query points -> (B,) f32.

    For very large acquisition sweeps, keep the queries in (D, B) lane-major
    layout and call entropy_batch_pallas_t directly to avoid the host-side
    transpose of the whole batch.
    """
    xq = jnp.asarray(xq, jnp.float32)
    B = xq.shape[0]
    xq_t = xq.reshape(B, -1).T
    return entropy_batch_pallas_t(xq_t, x_train, alpha, kinv,
                                  lengthscale, outputscale, noise, threshold,
                                  n_queries=B)


def entropy_forward(x, x_train, alpha, kinv,
                    lengthscale, outputscale, noise, threshold):
    """Matches Entropy.forward: x -> reshape(1, -1) -> z with shape (1,)."""
    xq = jnp.asarray(x, jnp.float32).reshape(1, -1)
    return entropy_batch_pallas(xq, x_train, alpha, kinv,
                                lengthscale, outputscale, noise, threshold)


def entropy_reference(xq, x_train, alpha, kinv,
                      lengthscale, outputscale, noise, threshold):
    """Pure-JAX reference mirroring the torch semantics (batched)."""
    xq = xq.reshape(xq.shape[0], -1).astype(jnp.float32)
    sqd = jnp.sum((xq[:, None, :] - x_train[None, :, :]) ** 2, axis=-1)  # (B, M)
    kstar = outputscale * jnp.exp(-0.5 * sqd / lengthscale ** 2)         # (B, M)
    mean = kstar @ jnp.reshape(alpha, (-1,))                             # (B,)
    qf = jnp.einsum('bm,mn,bn->b', kstar, kinv, kstar)
    var = outputscale + noise - qf
    zscore = (threshold - mean) / (var * jnp.sqrt(2.0))
    p = 1.0 - 0.5 * (1.0 + lax.erf(zscore))
    ent = (-p * jnp.log(jnp.maximum(p, 1e-38))
           - (1.0 - p) * jnp.log(jnp.maximum(1.0 - p, 1e-38)))
    ent = jnp.where((p <= 0.0) | (p >= 1.0), 0.0, ent)
    return ent


if __name__ == "__main__":
    key = jax.random.PRNGKey(0)
    k_x, k_xq, k_xtr, k_y = jax.random.split(key, 4)

    # Small shapes: test point x of shape (4, 4) -> D = 16 features; M = 64
    # deterministic synthetic GP training points; plus a small query batch.
    D_SIDE = 4
    D = D_SIDE * D_SIDE
    M = 64
    B = 5

    x = jax.random.normal(k_x, (D_SIDE, D_SIDE), dtype=jnp.float32)
    xq_batch = jax.random.normal(k_xq, (B, D), dtype=jnp.float32)
    x_train = jax.random.normal(k_xtr, (M, D), dtype=jnp.float32)
    y_train = jax.random.normal(k_y, (M,), dtype=jnp.float32)

    # Deterministic GP hyper-parameters (synthetic; not loaded from a
    # GPyTorch checkpoint).
    # TODO(synk): GPyTorch GPRegressionModel/likelihood hyper-parameters are
    # external state; a trained model would supply these instead.
    lengthscale = 2.0
    outputscale = 1.0
    noise = 0.1
    threshold = 0.75

    # Plain-JAX glue: build K, solve for alpha = K^{-1} y and Kinv once.
    d2 = jnp.sum((x_train[:, None, :] - x_train[None, :, :]) ** 2, axis=-1)
    K = (outputscale * jnp.exp(-0.5 * d2 / lengthscale ** 2)
         + noise * jnp.eye(M, dtype=jnp.float32))
    alpha = jnp.linalg.solve(K, y_train).reshape(M, 1).astype(jnp.float32)
    kinv = jnp.linalg.inv(K).astype(jnp.float32)

    # Tolerance note: the kernel uses the EUP approximate reciprocal
    # (pl.reciprocal(approx=True)) and a fused log-space RBF evaluation, which
    # introduce ~1e-3-level deviations from the exact-division reference.
    ATOL = 5e-3
    RTOL = 5e-3

    # 1) Single-point forward (exact module semantics: output shape (1,)).
    z = entropy_forward(x, x_train, alpha, kinv,
                        lengthscale, outputscale, noise, threshold)
    z = jax.block_until_ready(z)
    z_ref = entropy_reference(x.reshape(1, -1), x_train, alpha, kinv,
                              lengthscale, outputscale, noise, threshold)
    assert z.shape == (1,)
    assert bool(jnp.all(jnp.isfinite(z)))
    assert jnp.allclose(z, z_ref, atol=ATOL, rtol=RTOL), (z, z_ref)

    # 2) Batched queries (amortizes launch/DMA cost; GP state DMAed once per
    #    grid step and kept VMEM-resident).
    z_b = entropy_batch_pallas(xq_batch, x_train, alpha, kinv,
                               lengthscale, outputscale, noise, threshold)
    z_b = jax.block_until_ready(z_b)
    z_b_ref = entropy_reference(xq_batch, x_train, alpha, kinv,
                                lengthscale, outputscale, noise, threshold)
    assert z_b.shape == (B,)
    assert bool(jnp.all(jnp.isfinite(z_b)))
    assert jnp.allclose(z_b, z_b_ref, atol=ATOL, rtol=RTOL), (z_b, z_b_ref)

    print("KERNEL_OK")
</pallas_src>

<mosaic_0001>
module attributes {stable_mosaic.version = 11 : i64} {
  func.func @entropy_block_kernel(%arg0: i32, %arg1: memref<4xf32, #tpu.memory_space<smem>>, %arg2: memref<16x1024xf32, #tpu.memory_space<vmem>>, %arg3: memref<64x16xf32, #tpu.memory_space<vmem>>, %arg4: memref<72x64xf32, #tpu.memory_space<vmem>>, %arg5: memref<8x128xf32, #tpu.memory_space<vmem>>, %arg6: memref<8x128xf32, #tpu.memory_space<vmem>>, %arg7: memref<8x128xf32, #tpu.memory_space<vmem>>) attributes {dimension_semantics = [#tpu.dimension_semantics<parallel>], iteration_bounds = array<i64: 1>, scalar_prefetch = 0 : i64, scratch_operands = 2 : i64, tpu.core_type = #tpu.core_type<tc>, window_params = [{transform_indices = @transform_0, window_bounds = array<i64: 4>}, {transform_indices = @transform_1, window_bounds = array<i64: 16, 1024>}, {pipeline_mode = #tpu.pipeline_mode<synchronous>, transform_indices = @transform_2, window_bounds = array<i64: 64, 16>}, {pipeline_mode = #tpu.pipeline_mode<synchronous>, transform_indices = @transform_3, window_bounds = array<i64: 72, 64>}, {transform_indices = @transform_4, window_bounds = array<i64: 8, 128>}]} {
    %c0 = arith.constant 0 : index
    %0 = memref.load %arg1[%c0] : memref<4xf32, #tpu.memory_space<smem>>
    %c1 = arith.constant 1 : index
    %1 = memref.load %arg1[%c1] : memref<4xf32, #tpu.memory_space<smem>>
    %c2 = arith.constant 2 : index
    %2 = memref.load %arg1[%c2] : memref<4xf32, #tpu.memory_space<smem>>
    %c3 = arith.constant 3 : index
    %3 = memref.load %arg1[%c3] : memref<4xf32, #tpu.memory_space<smem>>
    %c0_0 = arith.constant 0 : index
    %c0_1 = arith.constant 0 : index
    %4 = vector.load %arg2[%c0_0, %c0_1] : memref<16x1024xf32, #tpu.memory_space<vmem>>, vector<16x1024xf32>
    %c0_2 = arith.constant 0 : index
    %c0_3 = arith.constant 0 : index
    %5 = vector.load %arg3[%c0_2, %c0_3] : memref<64x16xf32, #tpu.memory_space<vmem>>, vector<64x16xf32>
    %c0_4 = arith.constant 0 : index
    %c0_5 = arith.constant 0 : index
    %6 = vector.load %arg4[%c0_4, %c0_5] : memref<72x64xf32, #tpu.memory_space<vmem>>, vector<72x64xf32>
    %7 = arith.mulf %5, %5 : vector<64x16xf32>
    %cst = arith.constant dense<0.000000e+00> : vector<64xf32>
    %8 = vector.multi_reduction <add>, %7, %cst [1] : vector<64x16xf32> to vector<64xf32>
    %9 = vector.shape_cast %8 : vector<64xf32> to vector<64x1xf32>
    %cst_6 = arith.constant 5.000000e-01 : f32
    %10 = arith.mulf %cst_6, %0 : f32
    %11 = vector.broadcast %10 : f32 to vector<64x1xf32>
    %12 = arith.mulf %11, %9 : vector<64x1xf32>
    %13 = vector.broadcast %1 : f32 to vector<64x1xf32>
    %14 = arith.subf %13, %12 : vector<64x1xf32>
    %15 = arith.mulf %4, %4 : vector<16x1024xf32>
    %cst_7 = arith.constant dense<0.000000e+00> : vector<1024xf32>
    %16 = vector.multi_reduction <add>, %15, %cst_7 [0] : vector<16x1024xf32> to vector<1024xf32>
    %17 = vector.shape_cast %16 : vector<1024xf32> to vector<1x1024xf32>
    %cst_8 = arith.constant -5.000000e-01 : f32
    %18 = arith.mulf %cst_8, %0 : f32
    %19 = vector.broadcast %18 : f32 to vector<1x1024xf32>
    %20 = arith.mulf %19, %17 : vector<1x1024xf32>
    %21 = vector.broadcast %0 : f32 to vector<16x1024xf32>
    %22 = arith.mulf %4, %21 : vector<16x1024xf32>
    %cst_9 = arith.constant dense<0.000000e+00> : vector<64x1024xf32>
    %23 = tpu.matmul %5, %22, %cst_9 {dimension_numbers = #tpu.dot_dimension_numbers<[1], [0], [0], [1], [0, 0, 1, 1], [], []>} : vector<64x16xf32>, vector<16x1024xf32>, vector<64x1024xf32> -> vector<64x1024xf32>
    %24 = vector.broadcast %14 : vector<64x1xf32> to vector<64x1024xf32>
    %25 = arith.addf %23, %24 : vector<64x1024xf32>
    %26 = vector.broadcast %20 : vector<1x1024xf32> to vector<64x1024xf32>
    %27 = arith.addf %25, %26 : vector<64x1024xf32>
    %28 = math.exp %27 : vector<64x1024xf32>
    %cst_10 = arith.constant dense<0.000000e+00> : vector<72x1024xf32>
    %29 = tpu.matmul %6, %28, %cst_10 {dimension_numbers = #tpu.dot_dimension_numbers<[1], [0], [0], [1], [0, 0, 1, 1], [], []>} : vector<72x64xf32>, vector<64x1024xf32>, vector<72x1024xf32> -> vector<72x1024xf32>
    %30 = vector.extract_strided_slice %29 {offsets = [64, 0], sizes = [1, 1024], strides = [1, 1]} : vector<72x1024xf32> to vector<1x1024xf32>
    %31 = vector.extract_strided_slice %29 {offsets = [0, 0], sizes = [64, 1024], strides = [1, 1]} : vector<72x1024xf32> to vector<64x1024xf32>
    %32 = arith.mulf %28, %31 : vector<64x1024xf32>
    %cst_11 = arith.constant dense<0.000000e+00> : vector<1024xf32>
    %33 = vector.multi_reduction <add>, %32, %cst_11 [0] : vector<64x1024xf32> to vector<1024xf32>
    %34 = vector.shape_cast %33 : vector<1024xf32> to vector<1x1024xf32>
    %35 = vector.extract_strided_slice %30 {offsets = [0, 0], sizes = [1, 128], strides = [1, 1]} : vector<1x1024xf32> to vector<1x128xf32>
    %c0_12 = arith.constant 0 : index
    %c0_13 = arith.constant 0 : index
    %36 = vector.load %arg6[%c0_12, %c0_13] : memref<8x128xf32, #tpu.memory_space<vmem>>, vector<1x128xf32>
    tpu.vector_store %arg6[%c0_12, %c0_13], %35 {strides = array<i32>} : memref<8x128xf32, #tpu.memory_space<vmem>>, vector<1x128xf32>,
    %37 = vector.extract_strided_slice %34 {offsets = [0, 0], sizes = [1, 128], strides = [1, 1]} : vector<1x1024xf32> to vector<1x128xf32>
    %c0_14 = arith.constant 0 : index
    %c0_15 = arith.constant 0 : index
    %38 = vector.load %arg7[%c0_14, %c0_15] : memref<8x128xf32, #tpu.memory_space<vmem>>, vector<1x128xf32>
    tpu.vector_store %arg7[%c0_14, %c0_15], %37 {strides = array<i32>} : memref<8x128xf32, #tpu.memory_space<vmem>>, vector<1x128xf32>,
    %39 = vector.extract_strided_slice %30 {offsets = [0, 128], sizes = [1, 128], strides = [1, 1]} : vector<1x1024xf32> to vector<1x128xf32>
    %c1_16 = arith.constant 1 : index
    %c0_17 = arith.constant 0 : index
    %40 = vector.load %arg6[%c1_16, %c0_17] : memref<8x128xf32, #tpu.memory_space<vmem>>, vector<1x128xf32>
    tpu.vector_store %arg6[%c1_16, %c0_17], %39 {strides = array<i32>} : memref<8x128xf32, #tpu.memory_space<vmem>>, vector<1x128xf32>,
    %41 = vector.extract_strided_slice %34 {offsets = [0, 128], sizes = [1, 128], strides = [1, 1]} : vector<1x1024xf32> to vector<1x128xf32>
    %c1_18 = arith.constant 1 : index
    %c0_19 = arith.constant 0 : index
    %42 = vector.load %arg7[%c1_18, %c0_19] : memref<8x128xf32, #tpu.memory_space<vmem>>, vector<1x128xf32>
    tpu.vector_store %arg7[%c1_18, %c0_19], %41 {strides = array<i32>} : memref<8x128xf32, #tpu.memory_space<vmem>>, vector<1x128xf32>,
    %43 = vector.extract_strided_slice %30 {offsets = [0, 256], sizes = [1, 128], strides = [1, 1]} : vector<1x1024xf32> to vector<1x128xf32>
    %c2_20 = arith.constant 2 : index
    %c0_21 = arith.constant 0 : index
    %44 = vector.load %arg6[%c2_20, %c0_21] : memref<8x128xf32, #tpu.memory_space<vmem>>, vector<1x128xf32>
    tpu.vector_store %arg6[%c2_20, %c0_21], %43 {strides = array<i32>} : memref<8x128xf32, #tpu.memory_space<vmem>>, vector<1x128xf32>,
    %45 = vector.extract_strided_slice %34 {offsets = [0, 256], sizes = [1, 128], strides = [1, 1]} : vector<1x1024xf32> to vector<1x128xf32>
    %c2_22 = arith.constant 2 : index
    %c0_23 = arith.constant 0 : index
    %46 = vector.load %arg7[%c2_22, %c0_23] : memref<8x128xf32, #tpu.memory_space<vmem>>, vector<1x128xf32>
    tpu.vector_store %arg7[%c2_22, %c0_23], %45 {strides = array<i32>} : memref<8x128xf32, #tpu.memory_space<vmem>>, vector<1x128xf32>,
    %47 = vector.extract_strided_slice %30 {offsets = [0, 384], sizes = [1, 128], strides = [1, 1]} : vector<1x1024xf32> to vector<1x128xf32>
    %c3_24 = arith.constant 3 : index
    %c0_25 = arith.constant 0 : index
    %48 = vector.load %arg6[%c3_24, %c0_25] : memref<8x128xf32, #tpu.memory_space<vmem>>, vector<1x128xf32>
    tpu.vector_store %arg6[%c3_24, %c0_25], %47 {strides = array<i32>} : memref<8x128xf32, #tpu.memory_space<vmem>>, vector<1x128xf32>,
    %49 = vector.extract_strided_slice %34 {offsets = [0, 384], sizes = [1, 128], strides = [1, 1]} : vector<1x1024xf32> to vector<1x128xf32>
    %c3_26 = arith.constant 3 : index
    %c0_27 = arith.constant 0 : index
    %50 = vector.load %arg7[%c3_26, %c0_27] : memref<8x128xf32, #tpu.memory_space<vmem>>, vector<1x128xf32>
    tpu.vector_store %arg7[%c3_26, %c0_27], %49 {strides = array<i32>} : memref<8x128xf32, #tpu.memory_space<vmem>>, vector<1x128xf32>,
    %51 = vector.extract_strided_slice %30 {offsets = [0, 512], sizes = [1, 128], strides = [1, 1]} : vector<1x1024xf32> to vector<1x128xf32>
    %c4 = arith.constant 4 : index
    %c0_28 = arith.constant 0 : index
    %52 = vector.load %arg6[%c4, %c0_28] : memref<8x128xf32, #tpu.memory_space<vmem>>, vector<1x128xf32>
    tpu.vector_store %arg6[%c4, %c0_28], %51 {strides = array<i32>} : memref<8x128xf32, #tpu.memory_space<vmem>>, vector<1x128xf32>,
    %53 = vector.extract_strided_slice %34 {offsets = [0, 512], sizes = [1, 128], strides = [1, 1]} : vector<1x1024xf32> to vector<1x128xf32>
    %c4_29 = arith.constant 4 : index
    %c0_30 = arith.constant 0 : index
    %54 = vector.load %arg7[%c4_29, %c0_30] : memref<8x128xf32, #tpu.memory_space<vmem>>, vector<1x128xf32>
    tpu.vector_store %arg7[%c4_29, %c0_30], %53 {strides = array<i32>} : memref<8x128xf32, #tpu.memory_space<vmem>>, vector<1x128xf32>,
    %55 = vector.extract_strided_slice %30 {offsets = [0, 640], sizes = [1, 128], strides = [1, 1]} : vector<1x1024xf32> to vector<1x128xf32>
    %c5 = arith.constant 5 : index
    %c0_31 = arith.constant 0 : index
    %56 = vector.load %arg6[%c5, %c0_31] : memref<8x128xf32, #tpu.memory_space<vmem>>, vector<1x128xf32>
    tpu.vector_store %arg6[%c5, %c0_31], %55 {strides = array<i32>} : memref<8x128xf32, #tpu.memory_space<vmem>>, vector<1x128xf32>,
    %57 = vector.extract_strided_slice %34 {offsets = [0, 640], sizes = [1, 128], strides = [1, 1]} : vector<1x1024xf32> to vector<1x128xf32>
    %c5_32 = arith.constant 5 : index
    %c0_33 = arith.constant 0 : index
    %58 = vector.load %arg7[%c5_32, %c0_33] : memref<8x128xf32, #tpu.memory_space<vmem>>, vector<1x128xf32>
    tpu.vector_store %arg7[%c5_32, %c0_33], %57 {strides = array<i32>} : memref<8x128xf32, #tpu.memory_space<vmem>>, vector<1x128xf32>,
    %59 = vector.extract_strided_slice %30 {offsets = [0, 768], sizes = [1, 128], strides = [1, 1]} : vector<1x1024xf32> to vector<1x128xf32>
    %c6 = arith.constant 6 : index
    %c0_34 = arith.constant 0 : index
    %60 = vector.load %arg6[%c6, %c0_34] : memref<8x128xf32, #tpu.memory_space<vmem>>, vector<1x128xf32>
    tpu.vector_store %arg6[%c6, %c0_34], %59 {strides = array<i32>} : memref<8x128xf32, #tpu.memory_space<vmem>>, vector<1x128xf32>,
    %61 = vector.extract_strided_slice %34 {offsets = [0, 768], sizes = [1, 128], strides = [1, 1]} : vector<1x1024xf32> to vector<1x128xf32>
    %c6_35 = arith.constant 6 : index
    %c0_36 = arith.constant 0 : index
    %62 = vector.load %arg7[%c6_35, %c0_36] : memref<8x128xf32, #tpu.memory_space<vmem>>, vector<1x128xf32>
    tpu.vector_store %arg7[%c6_35, %c0_36], %61 {strides = array<i32>} : memref<8x128xf32, #tpu.memory_space<vmem>>, vector<1x128xf32>,
    %63 = vector.extract_strided_slice %30 {offsets = [0, 896], sizes = [1, 128], strides = [1, 1]} : vector<1x1024xf32> to vector<1x128xf32>
    %c7 = arith.constant 7 : index
    %c0_37 = arith.constant 0 : index
    %64 = vector.load %arg6[%c7, %c0_37] : memref<8x128xf32, #tpu.memory_space<vmem>>, vector<1x128xf32>
    tpu.vector_store %arg6[%c7, %c0_37], %63 {strides = array<i32>} : memref<8x128xf32, #tpu.memory_space<vmem>>, vector<1x128xf32>,
    %65 = vector.extract_strided_slice %34 {offsets = [0, 896], sizes = [1, 128], strides = [1, 1]} : vector<1x1024xf32> to vector<1x128xf32>
    %c7_38 = arith.constant 7 : index
    %c0_39 = arith.constant 0 : index
    %66 = vector.load %arg7[%c7_38, %c0_39] : memref<8x128xf32, #tpu.memory_space<vmem>>, vector<1x128xf32>
    tpu.vector_store %arg7[%c7_38, %c0_39], %65 {strides = array<i32>} : memref<8x128xf32, #tpu.memory_space<vmem>>, vector<1x128xf32>,
    %c0_40 = arith.constant 0 : index
    %c0_41 = arith.constant 0 : index
    %67 = vector.load %arg6[%c0_40, %c0_41] : memref<8x128xf32, #tpu.memory_space<vmem>>, vector<8x128xf32>
    %c0_42 = arith.constant 0 : index
    %c0_43 = arith.constant 0 : index
    %68 = vector.load %arg7[%c0_42, %c0_43] : memref<8x128xf32, #tpu.memory_space<vmem>>, vector<8x128xf32>
    %69 = vector.broadcast %2 : f32 to vector<8x128xf32>
    %70 = arith.subf %69, %68 : vector<8x128xf32>
    %cst_44 = arith.constant 9.99999996E-13 : f32
    %71 = vector.broadcast %cst_44 : f32 to vector<8x128xf32>
    %72 = arith.maximumf %70, %71 : vector<8x128xf32>
    %cst_45 = arith.constant 1.41421354 : f32
    %73 = vector.broadcast %cst_45 : f32 to vector<8x128xf32>
    %74 = arith.mulf %72, %73 : vector<8x128xf32>
    %75 = tpu.reciprocal %74 {approx = true} : vector<8x128xf32> -> vector<8x128xf32>
    %76 = vector.broadcast %3 : f32 to vector<8x128xf32>
    %77 = arith.subf %76, %67 : vector<8x128xf32>
    %78 = arith.mulf %77, %75 : vector<8x128xf32>
    %79 = math.erf %78 : vector<8x128xf32>
    %cst_46 = arith.constant 1.000000e+00 : f32
    %80 = vector.broadcast %cst_46 : f32 to vector<8x128xf32>
    %81 = arith.addf %80, %79 : vector<8x128xf32>
    %cst_47 = arith.constant 5.000000e-01 : f32
    %82 = vector.broadcast %cst_47 : f32 to vector<8x128xf32>
    %83 = arith.mulf %82, %81 : vector<8x128xf32>
    %cst_48 = arith.constant 1.000000e+00 : f32
    %84 = vector.broadcast %cst_48 : f32 to vector<8x128xf32>
    %85 = arith.subf %84, %83 : vector<8x128xf32>
    %cst_49 = arith.constant 1.000000e+00 : f32
    %86 = vector.broadcast %cst_49 : f32 to vector<8x128xf32>
    %87 = arith.subf %86, %85 : vector<8x128xf32>
    %cst_50 = arith.constant 0.000000e+00 : f32
    %88 = vector.broadcast %cst_50 : f32 to vector<8x128xf32>
    %89 = arith.subf %88, %85 : vector<8x128xf32>
    %cst_51 = arith.constant 9.99999935E-39 : f32
    %90 = vector.broadcast %cst_51 : f32 to vector<8x128xf32>
    %91 = arith.maximumf %85, %90 : vector<8x128xf32>
    %92 = math.log %91 : vector<8x128xf32>
    %93 = arith.mulf %89, %92 : vector<8x128xf32>
    %cst_52 = arith.constant 9.99999935E-39 : f32
    %94 = vector.broadcast %cst_52 : f32 to vector<8x128xf32>
    %95 = arith.maximumf %87, %94 : vector<8x128xf32>
    %96 = math.log %95 : vector<8x128xf32>
    %97 = arith.mulf %87, %96 : vector<8x128xf32>
    %98 = arith.subf %93, %97 : vector<8x128xf32>
    %cst_53 = arith.constant 0.000000e+00 : f32
    %99 = vector.broadcast %cst_53 : f32 to vector<8x128xf32>
    %100 = arith.cmpf ole, %85, %99 : vector<8x128xf32>
    %cst_54 = arith.constant 1.000000e+00 : f32
    %101 = vector.broadcast %cst_54 : f32 to vector<8x128xf32>
    %102 = arith.cmpf oge, %85, %101 : vector<8x128xf32>
    %103 = arith.ori %100, %102 : vector<8x128xi1>
    %cst_55 = arith.constant 0.000000e+00 : f32
    %104 = vector.broadcast %cst_55 : f32 to vector<8x128xf32>
    %105 = arith.select %103, %104, %98 : vector<8x128xi1>, vector<8x128xf32>
    %c0_56 = arith.constant 0 : index
    %c0_57 = arith.constant 0 : index
    %106 = vector.load %arg5[%c0_56, %c0_57] : memref<8x128xf32, #tpu.memory_space<vmem>>, vector<8x128xf32>
    tpu.vector_store %arg5[%c0_56, %c0_57], %105 {strides = array<i32>} : memref<8x128xf32, #tpu.memory_space<vmem>>, vector<8x128xf32>,
    return
  }
  func.func @transform_0(%arg0: i32) -> i32 {
    %c0_i32 = arith.constant 0 : i32
    %c0_i32_0 = arith.constant 0 : i32
    return %c0_i32 : i32
  }
  func.func @transform_1(%arg0: i32) -> (i32, i32) {
    %c0_i32 = arith.constant 0 : i32
    %c0_i32_0 = arith.constant 0 : i32
    return %c0_i32, %arg0 : i32, i32
  }
  func.func @transform_2(%arg0: i32) -> (i32, i32) {
    %c0_i32 = arith.constant 0 : i32
    %c0_i32_0 = arith.constant 0 : i32
    %c0_i32_1 = arith.constant 0 : i32
    return %c0_i32, %c0_i32_0 : i32, i32
  }
  func.func @transform_3(%arg0: i32) -> (i32, i32) {
    %c0_i32 = arith.constant 0 : i32
    %c0_i32_0 = arith.constant 0 : i32
    %c0_i32_1 = arith.constant 0 : i32
    return %c0_i32, %c0_i32_0 : i32, i32
  }
  func.func @transform_4(%arg0: i32) -> (i32, i32) {
    %c0_i32 = arith.constant 0 : i32
    %c0_i32_0 = arith.constant 0 : i32
    return %arg0, %c0_i32 : i32, i32
  }
}

</mosaic_0001>

<llo_original>
// kernel: tpu_custom_call.1
$region0: #{tpu_custom_call.1}
  #allocation0 [shape = 'u32[]', space=smem, size = 0x4, offset = 0x4, fixed_abs, tag = 'smem constant byte address 0x4 - core index']
  #allocation1 [shape = 'u32[144,128]{1,0:T(1,128)}', space=vmem, size = 0x12000, scoped, tag = 'internal scratch']
  #allocation2 [shape = 'f32[8,128]{1,0:T(8,128)}', space=vmem, size = 0x1000, scoped, tag = 'scratch operand']
  #allocation3 [shape = 'f32[8,128]{1,0:T(8,128)}', space=vmem, size = 0x1000, scoped, tag = 'scratch operand']
  %s0 = inlined_call_operand.vmem [shape: f32[4], index: 0, kind: input, shape index: {}]
  %s1 = inlined_call_operand.vmem [shape: f32[16,1024], index: 1, kind: input, shape index: {}]
  %s2 = inlined_call_operand.vmem [shape: f32[64,16], index: 2, kind: input, shape index: {}]
  %s3 = inlined_call_operand.vmem [shape: f32[72,64], index: 3, kind: input, shape index: {}]
  %s4 = inlined_call_operand.hbm [shape: f32[8,128], index: 4, kind: output, shape index: {}]
  %s5 = sld [smem:[#allocation0]]
  $region30: #{tpu_custom_call.1} parent=0
    _
  %s7 = ssub.s32 1, %s5
  %s8 = scalar_select 0, %s7, %s5
  $region1: #{tpu_custom_call.1} parent=0
    #allocation4 [shape = 'u8[512]{0}', space=smem, size = 0x200, scoped, tag = 'input window, operand 0, single buffered']
    #allocation5 [shape = 's32[1]{0}', space=sflag, size = 0x4, scoped, tag = 'scoped memory for tpu_custom_call.1']
    #allocation6 [shape = 's32[1]{0}', space=sflag, size = 0x4, scoped, tag = 'scoped memory for tpu_custom_call.1']
    #allocation7 [shape = 'u8[4096]{0}', space=vmem, size = 0x1000, scoped, tag = 'output window, operand 0, single buffered']
    %9 = vsyncpa [#allocation6], 0
    %10 = vsyncpa [#allocation5], 0
    // Predicated region
    $region2: #{tpu_custom_call.1} parent=1 // pred_check
      _
    $region3: #{tpu_custom_call.1} parent=1 // pred_check_branch
      %12 = sbr.rel (0) target = $region5
    $region4: #{tpu_custom_call.1} parent=1 // pred_region
      %s14 = ssub.s32 16, 16
      %15 = vsyncadd [#allocation6], %s14
      %s17 = sshll.u32 %s0, 4
      %s18 = int_to_ptr.vmem [resolvable:$true] %s17
      %20 = dma.vmem_to_smem %s18, 16, [#allocation4], [#allocation6]
    $region5: #{tpu_custom_call.1} parent=1 // pred_fallthru
      _
    // Predicated region
    $region6: #{tpu_custom_call.1} parent=1 // pred_check
      _
    $region7: #{tpu_custom_call.1} parent=1 // pred_check_branch
      %22 = sbr.rel (0) target = $region9
    $region8: #{tpu_custom_call.1} parent=1 // pred_region
      _
    $region9: #{tpu_custom_call.1} parent=1 // pred_fallthru
      _
    // Predicated region
    $region10: #{tpu_custom_call.1} parent=1 // pred_check
      _
    $region11: #{tpu_custom_call.1} parent=1 // pred_check_branch
      %24 = sbr.rel (0) target = $region13
    $region12: #{tpu_custom_call.1} parent=1 // pred_region
      _
    $region13: #{tpu_custom_call.1} parent=1 // pred_fallthru
      _
    // Predicated region
    $region14: #{tpu_custom_call.1} parent=1 // pred_check
      _
    $region15: #{tpu_custom_call.1} parent=1 // pred_check_branch
      %26 = sbr.rel (0) target = $region17
    $region16: #{tpu_custom_call.1} parent=1 // pred_region
      _
    $region17: #{tpu_custom_call.1} parent=1 // pred_fallthru
      _
    // Predicated region
    $region18: #{tpu_custom_call.1} parent=1 // pred_check
      _
    $region19: #{tpu_custom_call.1} parent=1 // pred_check_branch
      %28 = sbr.rel (0) target = $region21
    $region20: #{tpu_custom_call.1} parent=1 // pred_region
      %29 = dma.done [#allocation6], 16
    $region21: #{tpu_custom_call.1} parent=1 // pred_fallthru
      _
    %30 = sfence
    %s31 = sld [smem:[#allocation4]]
    %s32 = sld [smem:[#allocation4 + $0x1]]
    %s33 = sld [smem:[#allocation4 + $0x2]]
    %s34 = sld [smem:[#allocation4 + $0x3]]
    %v35 = vld [vmem:[%s1] sm:$0xff]
    %v36 = vld [vmem:[%s1 + $0x8] sm:$0xff]
    %v37 = vld [vmem:[%s1 + $0x10] sm:$0xff]
    %v38 = vld [vmem:[%s1 + $0x18] sm:$0xff]
    %v39 = vld [vmem:[%s1 + $0x20] sm:$0xff]
    %v40 = vld [vmem:[%s1 + $0x28] sm:$0xff]
    %v41 = vld [vmem:[%s1 + $0x30] sm:$0xff]
    %v42 = vld [vmem:[%s1 + $0x38] sm:$0xff]
    %v43 = vld [vmem:[%s1 + $0x40] sm:$0xff]
    %v44 = vld [vmem:[%s1 + $0x48] sm:$0xff]
    %v45 = vld [vmem:[%s1 + $0x50] sm:$0xff]
    %v46 = vld [vmem:[%s1 + $0x58] sm:$0xff]
    %v47 = vld [vmem:[%s1 + $0x60] sm:$0xff]
    %v48 = vld [vmem:[%s1 + $0x68] sm:$0xff]
    %v49 = vld [vmem:[%s1 + $0x70] sm:$0xff]
    %v50 = vld [vmem:[%s1 + $0x78] sm:$0xff]
    %v51 = vld [vmem:[%s2] sm:$0xff]
    %v52 = vld [vmem:[%s2 + $0x8] sm:$0xff]
    %v53 = vld [vmem:[%s2 + $0x10] sm:$0xff]
    %v54 = vld [vmem:[%s2 + $0x18] sm:$0xff]
    %v55 = vld [vmem:[%s2 + $0x20] sm:$0xff]
    %v56 = vld [vmem:[%s2 + $0x28] sm:$0xff]
    %v57 = vld [vmem:[%s2 + $0x30] sm:$0xff]
    %v58 = vld [vmem:[%s2 + $0x38] sm:$0xff]
    %v59 = vld [vmem:[%s3] sm:$0xff]
    %v60 = vld [vmem:[%s3 + $0x8] sm:$0xff]
    %v61 = vld [vmem:[%s3 + $0x10] sm:$0xff]
    %v62 = vld [vmem:[%s3 + $0x18] sm:$0xff]
    %v63 = vld [vmem:[%s3 + $0x20] sm:$0xff]
    %v64 = vld [vmem:[%s3 + $0x28] sm:$0xff]
    %v65 = vld [vmem:[%s3 + $0x30] sm:$0xff]
    %v66 = vld [vmem:[%s3 + $0x38] sm:$0xff]
    %v67 = vld [vmem:[%s3 + $0x40] sm:$0xff]
    %v68 = vmul.f32 %v51, %v51
    %v69 = vmul.f32 %v52, %v52
    %v70 = vmul.f32 %v53, %v53
    %v71 = vmul.f32 %v54, %v54
    %v72 = vmul.f32 %v55, %v55
    %v73 = vmul.f32 %v56, %v56
    %v74 = vmul.f32 %v57, %v57
    %v75 = vmul.f32 %v58, %v58
    %vm76 = vcmask 130048
    %v77 = vsel %vm76, %v68, 0.0
    %78 = vadd.xlane.f32.xlu0 %v77
    %v79 = vpop.xlane.xlu0 %78
    %v80 = vsel %vm76, %v69, 0.0
    %81 = vadd.xlane.f32.xlu0 %v80
    %v82 = vpop.xlane.xlu0 %81
    %v83 = vsel %vm76, %v70, 0.0
    %84 = vadd.xlane.f32.xlu0 %v83
    %v85 = vpop.xlane.xlu0 %84
    %v86 = vsel %vm76, %v71, 0.0
    %87 = vadd.xlane.f32.xlu0 %v86
    %v88 = vpop.xlane.xlu0 %87
    %v89 = vsel %vm76, %v72, 0.0
    %90 = vadd.xlane.f32.xlu0 %v89
    %v91 = vpop.xlane.xlu0 %90
    %v92 = vsel %vm76, %v73, 0.0
    %93 = vadd.xlane.f32.xlu0 %v92
    %v94 = vpop.xlane.xlu0 %93
    %v95 = vsel %vm76, %v74, 0.0
    %96 = vadd.xlane.f32.xlu0 %v95
    %v97 = vpop.xlane.xlu0 %96
    %v98 = vsel %vm76, %v75, 0.0
    %99 = vadd.xlane.f32.xlu0 %v98
    %v100 = vpop.xlane.xlu0 %99
    %s101 = smul.f32 %s31, 0.5
    %v102 = vstv %s101
    %v103 = vmul.f32 %v102, %v79
    %v104 = vmul.f32 %v102, %v82
    %v105 = vmul.f32 %v102, %v85
    %v106 = vmul.f32 %v102, %v88
    %v107 = vmul.f32 %v102, %v91
    %v108 = vmul.f32 %v102, %v94
    %v109 = vmul.f32 %v102, %v97
    %v110 = vmul.f32 %v102, %v100
    %v111 = vstv %s32
    %v112 = vsub.f32 %v111, %v103
    %v113 = vsub.f32 %v111, %v104
    %v114 = vsub.f32 %v111, %v105
    %v115 = vsub.f32 %v111, %v106
    %v116 = vsub.f32 %v111, %v107
    %v117 = vsub.f32 %v111, %v108
    %v118 = vsub.f32 %v111, %v109
    %v119 = vsub.f32 %v111, %v110
    %v120 = vmul.f32 %v35, %v35
    %v121 = vmul.f32 %v36, %v36
    %v122 = vmul.f32 %v37, %v37
    %v123 = vmul.f32 %v38, %v38
    %v124 = vmul.f32 %v39, %v39
    %v125 = vmul.f32 %v40, %v40
    %v126 = vmul.f32 %v41, %v41
    %v127 = vmul.f32 %v42, %v42
    %v128 = vmul.f32 %v43, %v43
    %v129 = vmul.f32 %v44, %v44
    %v130 = vmul.f32 %v45, %v45
    %v131 = vmul.f32 %v46, %v46
    %v132 = vmul.f32 %v47, %v47
    %v133 = vmul.f32 %v48, %v48
    %v134 = vmul.f32 %v49, %v49
    %v135 = vmul.f32 %v50, %v50
    %v136 = vadd.f32 %v120, %v128
    %v137 = vrot.slane %v136, 4
    %v138 = vadd.f32 %v136, %v137
    %v139 = vrot.slane %v138, 2
    %v140 = vadd.f32 %v138, %v139
    %v141 = vrot.slane %v140, 1
    %v142 = vadd.f32 %v140, %v141
    %v143 = vadd.f32 %v121, %v129
    %v144 = vrot.slane %v143, 4
    %v145 = vadd.f32 %v143, %v144
    %v146 = vrot.slane %v145, 2
    %v147 = vadd.f32 %v145, %v146
    %v148 = vrot.slane %v147, 1
    %v149 = vadd.f32 %v147, %v148
    %v150 = vadd.f32 %v122, %v130
    %v151 = vrot.slane %v150, 4
    %v152 = vadd.f32 %v150, %v151
    %v153 = vrot.slane %v152, 2
    %v154 = vadd.f32 %v152, %v153
    %v155 = vrot.slane %v154, 1
    %v156 = vadd.f32 %v154, %v155
    %v157 = vadd.f32 %v123, %v131
    %v158 = vrot.slane %v157, 4
    %v159 = vadd.f32 %v157, %v158
    %v160 = vrot.slane %v159, 2
    %v161 = vadd.f32 %v159, %v160
    %v162 = vrot.slane %v161, 1
    %v163 = vadd.f32 %v161, %v162
    %v164 = vadd.f32 %v124, %v132
    %v165 = vrot.slane %v164, 4
    %v166 = vadd.f32 %v164, %v165
    %v167 = vrot.slane %v166, 2
    %v168 = vadd.f32 %v166, %v167
    %v169 = vrot.slane %v168, 1
    %v170 = vadd.f32 %v168, %v169
    %v171 = vadd.f32 %v125, %v133
    %v172 = vrot.slane %v171, 4
    %v173 = vadd.f32 %v171, %v172
    %v174 = vrot.slane %v173, 2
    %v175 = vadd.f32 %v173, %v174
    %v176 = vrot.slane %v175, 1
    %v177 = vadd.f32 %v175, %v176
    %v178 = vadd.f32 %v126, %v134
    %v179 = vrot.slane %v178, 4
    %v180 = vadd.f32 %v178, %v179
    %v181 = vrot.slane %v180, 2
    %v182 = vadd.f32 %v180, %v181
    %v183 = vrot.slane %v182, 1
    %v184 = vadd.f32 %v182, %v183
    %v185 = vadd.f32 %v127, %v135
    %v186 = vrot.slane %v185, 4
    %v187 = vadd.f32 %v185, %v186
    %v188 = vrot.slane %v187, 2
    %v189 = vadd.f32 %v187, %v188
    %v190 = vrot.slane %v189, 1
    %v191 = vadd.f32 %v189, %v190
    %s192 = smul.f32 %s31, -0.5
    %v193 = vstv %s192
    %v194 = vmul.f32 %v193, %v142
    %v195 = vmul.f32 %v193, %v149
    %v196 = vmul.f32 %v193, %v156
    %v197 = vmul.f32 %v193, %v163
    %v198 = vmul.f32 %v193, %v170
    %v199 = vmul.f32 %v193, %v177
    %v200 = vmul.f32 %v193, %v184
    %v201 = vmul.f32 %v193, %v191
    %v202 = vstv %s31
    %v203 = vmul.f32 %v35, %v202
    %v204 = vmul.f32 %v36, %v202
    %v205 = vmul.f32 %v37, %v202
    %v206 = vmul.f32 %v38, %v202
    %v207 = vmul.f32 %v39, %v202
    %v208 = vmul.f32 %v40, %v202
    %v209 = vmul.f32 %v41, %v202
    %v210 = vmul.f32 %v42, %v202
    %v211 = vmul.f32 %v43, %v202
    %v212 = vmul.f32 %v44, %v202
    %v213 = vmul.f32 %v45, %v202
    %v214 = vmul.f32 %v46, %v202
    %v215 = vmul.f32 %v47, %v202
    %v216 = vmul.f32 %v48, %v202
    %v217 = vmul.f32 %v49, %v202
    %v218 = vmul.f32 %v50, %v202
    %v220 = vsel %vm76, %v51, 0
    %v223 = vsel %vm76, %v52, 0
    %v226 = vsel %vm76, %v53, 0
    %v229 = vsel %vm76, %v54, 0
    %v232 = vsel %vm76, %v55, 0
    %v235 = vsel %vm76, %v56, 0
    %v238 = vsel %vm76, %v57, 0
    %v241 = vsel %vm76, %v58, 0
    %243 = vmatprep.subr.mxu0 %v204
    %244 = vmatpush1.msra.mxu0 %v203
    %245 = vmatprep.subr.mxu0 %v212
    %246 = vmatpush1.msra.mxu0 %v211
    %247 = vmatprep.subr.mxu0 0.0
    %248 = vmatpush1.msra.mxu0 0.0
    %249 = vmatprep.subr.mxu0 0.0
    %250 = vmatpush1.msra.mxu0 0.0
    %251 = vmatprep.subr.mxu0 0.0
    %252 = vmatpush1.msra.mxu0 0.0
    %253 = vmatprep.subr.mxu0 0.0
    %254 = vmatpush1.msra.mxu0 0.0
    %255 = vmatprep.subr.mxu0 0.0
    %256 = vmatpush1.msra.mxu0 0.0
    %257 = vmatprep.subr.mxu0 0.0
    %258 = vmatpush1.msra.mxu0 0.0
    %259 = vmatprep.subr.mxu0 0.0
    %260 = vmatpush1.msra.mxu0 0.0
    %261 = vmatprep.subr.mxu0 0.0
    %262 = vmatpush1.msra.mxu0 0.0
    %263 = vmatprep.subr.mxu0 0.0
    %264 = vmatpush1.msra.mxu0 0.0
    %265 = vmatprep.subr.mxu0 0.0
    %266 = vmatpush1.msra.mxu0 0.0
    %267 = vmatprep.subr.mxu0 0.0
    %268 = vmatpush1.msra.mxu0 0.0
    %269 = vmatprep.subr.mxu0 0.0
    %270 = vmatpush1.msra.mxu0 0.0
    %271 = vmatprep.subr.mxu0 0.0
    %272 = vmatpush1.msra.mxu0 0.0
    %273 = vmatprep.subr.mxu0 0.0
    %274 = vmatpush1.msra.mxu0 0.0
    %275 = vmatprep.subr.mxu0 0.0
    %276 = vmatpush1.msra.mxu0 0.0
    %277 = vmatprep.subr.mxu0 0.0
    %278 = vmatpush1.msra.mxu0 0.0
    %279 = vmatprep.subr.mxu0 0.0
    %280 = vmatpush1.msra.mxu0 0.0
    %281 = vmatprep.subr.mxu0 0.0
    %282 = vmatpush1.msra.mxu0 0.0
    %283 = vmatprep.subr.mxu0 0.0
    %284 = vmatpush1.msra.mxu0 0.0
    %285 = vmatprep.subr.mxu0 0.0
    %286 = vmatpush1.msra.mxu0 0.0
    %287 = vmatprep.subr.mxu0 0.0
    %288 = vmatpush1.msra.mxu0 0.0
    %289 = vmatprep.subr.mxu0 0.0
    %290 = vmatpush1.msra.mxu0 0.0
    %291 = vmatprep.subr.mxu0 0.0
    %292 = vmatpush1.msra.mxu0 0.0
    %293 = vmatprep.subr.mxu0 0.0
    %294 = vmatpush1.msra.mxu0 0.0
    %295 = vmatprep.subr.mxu0 0.0
    %296 = vmatpush1.msra.mxu0 0.0
    %297 = vmatprep.subr.mxu0 0.0
    %298 = vmatpush1.msra.mxu0 0.0
    %299 = vmatprep.subr.mxu0 0.0
    %300 = vmatpush1.msra.mxu0 0.0
    %301 = vmatprep.subr.mxu0 0.0
    %302 = vmatpush1.msra.mxu0 0.0
    %303 = vmatprep.subr.mxu0 0.0
    %304 = vmatpush1.msra.mxu0 0.0
    %305 = vmatprep.subr.mxu0 0.0
    %306 = vmatpush1.msra.mxu0 0.0
    %307 = vmatprep.mubr.f32.mxu0 0.0
    %308 = vmatmul.mubr.f32.gmra.mrb[0].mxu0 %v220
    %v309 = vpop.f32.mrb[0].mxu0
    %v310 = vadd.f32 %v112, %v309
    %v311 = vpop.f32.mrb[0].mxu0
    %v312 = vadd.f32 %v112, %v311
    %313 = vmatprep.mubr.f32.mxu0 0.0
    %314 = vmatmul.mubr.f32.gmra.mrb[0].mxu0 %v223
    %v315 = vpop.f32.mrb[0].mxu0
    %v316 = vadd.f32 %v113, %v315
    %v317 = vpop.f32.mrb[0].mxu0
    %v318 = vadd.f32 %v113, %v317
    %319 = vmatprep.mubr.f32.mxu0 0.0
    %320 = vmatmul.mubr.f32.gmra.mrb[0].mxu0 %v226
    %v321 = vpop.f32.mrb[0].mxu0
    %v322 = vadd.f32 %v114, %v321
    %v323 = vpop.f32.mrb[0].mxu0
    %v324 = vadd.f32 %v114, %v323
    %325 = vmatprep.mubr.f32.mxu0 0.0
    %326 = vmatmul.mubr.f32.gmra.mrb[0].mxu0 %v229
    %v327 = vpop.f32.mrb[0].mxu0
    %v328 = vadd.f32 %v115, %v327
    %v329 = vpop.f32.mrb[0].mxu0
    %v330 = vadd.f32 %v115, %v329
    %331 = vmatprep.mubr.f32.mxu0 0.0
    %332 = vmatmul.mubr.f32.gmra.mrb[0].mxu0 %v232
    %v333 = vpop.f32.mrb[0].mxu0
    %v334 = vadd.f32 %v116, %v333
    %v335 = vpop.f32.mrb[0].mxu0
    %v336 = vadd.f32 %v116, %v335
    %337 = vmatprep.mubr.f32.mxu0 0.0
    %338 = vmatmul.mubr.f32.gmra.mrb[0].mxu0 %v235
    %v339 = vpop.f32.mrb[0].mxu0
    %v340 = vadd.f32 %v117, %v339
    %v341 = vpop.f32.mrb[0].mxu0
    %v342 = vadd.f32 %v117, %v341
    %343 = vmatprep.mubr.f32.mxu0 0.0
    %344 = vmatmul.mubr.f32.gmra.mrb[0].mxu0 %v238
    %v345 = vpop.f32.mrb[0].mxu0
    %v346 = vadd.f32 %v118, %v345
    %v347 = vpop.f32.mrb[0].mxu0
    %v348 = vadd.f32 %v118, %v347
    %349 = vmatprep.mubr.f32.mxu0 0.0
    %350 = vmatmul.mubr.f32.gmra.mrb[0].mxu0 %v241
    %v351 = vpop.f32.mrb[0].mxu0
    %v352 = vadd.f32 %v119, %v351
    %v353 = vpop.f32.mrb[0].mxu0
    %v354 = vadd.f32 %v119, %v353
    %355 = vdwg.mxu0
    %356 = vmatprep.subr.mxu0 %v206
    %357 = vmatpush1.msra.mxu0 %v205
    %358 = vmatprep.subr.mxu0 %v214
    %359 = vmatpush1.msra.mxu0 %v213
    %360 = vmatprep.subr.mxu0 0.0
    %361 = vmatpush1.msra.mxu0 0.0
    %362 = vmatprep.subr.mxu0 0.0
    %363 = vmatpush1.msra.mxu0 0.0
    %364 = vmatprep.subr.mxu0 0.0
    %365 = vmatpush1.msra.mxu0 0.0
    %366 = vmatprep.subr.mxu0 0.0
    %367 = vmatpush1.msra.mxu0 0.0
    %368 = vmatprep.subr.mxu0 0.0
    %369 = vmatpush1.msra.mxu0 0.0
    %370 = vmatprep.subr.mxu0 0.0
    %371 = vmatpush1.msra.mxu0 0.0
    %372 = vmatprep.subr.mxu0 0.0
    %373 = vmatpush1.msra.mxu0 0.0
    %374 = vmatprep.subr.mxu0 0.0
    %375 = vmatpush1.msra.mxu0 0.0
    %376 = vmatprep.subr.mxu0 0.0
    %377 = vmatpush1.msra.mxu0 0.0
    %378 = vmatprep.subr.mxu0 0.0
    %379 = vmatpush1.msra.mxu0 0.0
    %380 = vmatprep.subr.mxu0 0.0
    %381 = vmatpush1.msra.mxu0 0.0
    %382 = vmatprep.subr.mxu0 0.0
    %383 = vmatpush1.msra.mxu0 0.0
    %384 = vmatprep.subr.mxu0 0.0
    %385 = vmatpush1.msra.mxu0 0.0
    %386 = vmatprep.subr.mxu0 0.0
    %387 = vmatpush1.msra.mxu0 0.0
    %388 = vmatprep.subr.mxu0 0.0
    %389 = vmatpush1.msra.mxu0 0.0
    %390 = vmatprep.subr.mxu0 0.0
    %391 = vmatpush1.msra.mxu0 0.0
    %392 = vmatprep.subr.mxu0 0.0
    %393 = vmatpush1.msra.mxu0 0.0
    %394 = vmatprep.subr.mxu0 0.0
    %395 = vmatpush1.msra.mxu0 0.0
    %396 = vmatprep.subr.mxu0 0.0
    %397 = vmatpush1.msra.mxu0 0.0
    %398 = vmatprep.subr.mxu0 0.0
    %399 = vmatpush1.msra.mxu0 0.0
    %400 = vmatprep.subr.mxu0 0.0
    %401 = vmatpush1.msra.mxu0 0.0
    %402 = vmatprep.subr.mxu0 0.0
    %403 = vmatpush1.msra.mxu0 0.0
    %404 = vmatprep.subr.mxu0 0.0
    %405 = vmatpush1.msra.mxu0 0.0
    %406 = vmatprep.subr.mxu0 0.0
    %407 = vmatpush1.msra.mxu0 0.0
    %408 = vmatprep.subr.mxu0 0.0
    %409 = vmatpush1.msra.mxu0 0.0
    %410 = vmatprep.subr.mxu0 0.0
    %411 = vmatpush1.msra.mxu0 0.0
    %412 = vmatprep.subr.mxu0 0.0
    %413 = vmatpush1.msra.mxu0 0.0
    %414 = vmatprep.subr.mxu0 0.0
    %415 = vmatpush1.msra.mxu0 0.0
    %416 = vmatprep.subr.mxu0 0.0
    %417 = vmatpush1.msra.mxu0 0.0
    %418 = vmatprep.subr.mxu0 0.0
    %419 = vmatpush1.msra.mxu0 0.0
    %420 = vmatprep.mubr.f32.mxu0 0.0
    %421 = vmatmul.mubr.f32.gmra.mrb[0].mxu0 %v220
    %v422 = vpop.f32.mrb[0].mxu0
    %v423 = vadd.f32 %v112, %v422
    %v424 = vpop.f32.mrb[0].mxu0
    %v425 = vadd.f32 %v112, %v424
    %426 = vmatprep.mubr.f32.mxu0 0.0
    %427 = vmatmul.mubr.f32.gmra.mrb[0].mxu0 %v223
    %v428 = vpop.f32.mrb[0].mxu0
    %v429 = vadd.f32 %v113, %v428
    %v430 = vpop.f32.mrb[0].mxu0
    %v431 = vadd.f32 %v113, %v430
    %432 = vmatprep.mubr.f32.mxu0 0.0
    %433 = vmatmul.mubr.f32.gmra.mrb[0].mxu0 %v226
    %v434 = vpop.f32.mrb[0].mxu0
    %v435 = vadd.f32 %v114, %v434
    %v436 = vpop.f32.mrb[0].mxu0
    %v437 = vadd.f32 %v114, %v436
    %438 = vmatprep.mubr.f32.mxu0 0.0
    %439 = vmatmul.mubr.f32.gmra.mrb[0].mxu0 %v229
    %v440 = vpop.f32.mrb[0].mxu0
    %v441 = vadd.f32 %v115, %v440
    %v442 = vpop.f32.mrb[0].mxu0
    %v443 = vadd.f32 %v115, %v442
    %444 = vmatprep.mubr.f32.mxu0 0.0
    %445 = vmatmul.mubr.f32.gmra.mrb[0].mxu0 %v232
    %v446 = vpop.f32.mrb[0].mxu0
    %v447 = vadd.f32 %v116, %v446
    %v448 = vpop.f32.mrb[0].mxu0
    %v449 = vadd.f32 %v116, %v448
    %450 = vmatprep.mubr.f32.mxu0 0.0
    %451 = vmatmul.mubr.f32.gmra.mrb[0].mxu0 %v235
    %v452 = vpop.f32.mrb[0].mxu0
    %v453 = vadd.f32 %v117, %v452
    %v454 = vpop.f32.mrb[0].mxu0
    %v455 = vadd.f32 %v117, %v454
    %456 = vmatprep.mubr.f32.mxu0 0.0
    %457 = vmatmul.mubr.f32.gmra.mrb[0].mxu0 %v238
    %v458 = vpop.f32.mrb[0].mxu0
    %v459 = vadd.f32 %v118, %v458
    %v460 = vpop.f32.mrb[0].mxu0
    %v461 = vadd.f32 %v118, %v460
    %462 = vmatprep.mubr.f32.mxu0 0.0
    %463 = vmatmul.mubr.f32.gmra.mrb[0].mxu0 %v241
    %v464 = vpop.f32.mrb[0].mxu0
    %v465 = vadd.f32 %v119, %v464
    %v466 = vpop.f32.mrb[0].mxu0
    %v467 = vadd.f32 %v119, %v466
    %468 = vdwg.mxu0
    %469 = vmatprep.subr.mxu0 %v208
    %470 = vmatpush1.msra.mxu0 %v207
    %471 = vmatprep.subr.mxu0 %v216
    %472 = vmatpush1.msra.mxu0 %v215
    %473 = vmatprep.subr.mxu0 0.0
    %474 = vmatpush1.msra.mxu0 0.0
    %475 = vmatprep.subr.mxu0 0.0
    %476 = vmatpush1.msra.mxu0 0.0
    %477 = vmatprep.subr.mxu0 0.0
    %478 = vmatpush1.msra.mxu0 0.0
    %479 = vmatprep.subr.mxu0 0.0
    %480 = vmatpush1.msra.mxu0 0.0
    %481 = vmatprep.subr.mxu0 0.0
    %482 = vmatpush1.msra.mxu0 0.0
    %483 = vmatprep.subr.mxu0 0.0
    %484 = vmatpush1.msra.mxu0 0.0
    %485 = vmatprep.subr.mxu0 0.0
    %486 = vmatpush1.msra.mxu0 0.0
    %487 = vmatprep.subr.mxu0 0.0
    %488 = vmatpush1.msra.mxu0 0.0
    %489 = vmatprep.subr.mxu0 0.0
    %490 = vmatpush1.msra.mxu0 0.0
    %491 = vmatprep.subr.mxu0 0.0
    %492 = vmatpush1.msra.mxu0 0.0
    %493 = vmatprep.subr.mxu0 0.0
    %494 = vmatpush1.msra.mxu0 0.0
    %495 = vmatprep.subr.mxu0 0.0
    %496 = vmatpush1.msra.mxu0 0.0
    %497 = vmatprep.subr.mxu0 0.0
    %498 = vmatpush1.msra.mxu0 0.0
    %499 = vmatprep.subr.mxu0 0.0
    %500 = vmatpush1.msra.mxu0 0.0
    %501 = vmatprep.subr.mxu0 0.0
    %502 = vmatpush1.msra.mxu0 0.0
    %503 = vmatprep.subr.mxu0 0.0
    %504 = vmatpush1.msra.mxu0 0.0
    %505 = vmatprep.subr.mxu0 0.0
    %506 = vmatpush1.msra.mxu0 0.0
    %507 = vmatprep.subr.mxu0 0.0
    %508 = vmatpush1.msra.mxu0 0.0
    %509 = vmatprep.subr.mxu0 0.0
    %510 = vmatpush1.msra.mxu0 0.0
    %511 = vmatprep.subr.mxu0 0.0
    %512 = vmatpush1.msra.mxu0 0.0
    %513 = vmatprep.subr.mxu0 0.0
    %514 = vmatpush1.msra.mxu0 0.0
    %515 = vmatprep.subr.mxu0 0.0
    %516 = vmatpush1.msra.mxu0 0.0
    %517 = vmatprep.subr.mxu0 0.0
    %518 = vmatpush1.msra.mxu0 0.0
    %519 = vmatprep.subr.mxu0 0.0
    %520 = vmatpush1.msra.mxu0 0.0
    %521 = vmatprep.subr.mxu0 0.0
    %522 = vmatpush1.msra.mxu0 0.0
    %523 = vmatprep.subr.mxu0 0.0
    %524 = vmatpush1.msra.mxu0 0.0
    %525 = vmatprep.subr.mxu0 0.0
    %526 = vmatpush1.msra.mxu0 0.0
    %527 = vmatprep.subr.mxu0 0.0
    %528 = vmatpush1.msra.mxu0 0.0
    %529 = vmatprep.subr.mxu0 0.0
    %530 = vmatpush1.msra.mxu0 0.0
    %531 = vmatprep.subr.mxu0 0.0
    %532 = vmatpush1.msra.mxu0 0.0
    %533 = vmatprep.mubr.f32.mxu0 0.0
    %534 = vmatmul.mubr.f32.gmra.mrb[0].mxu0 %v220
    %v535 = vpop.f32.mrb[0].mxu0
    %v536 = vadd.f32 %v112, %v535
    %v537 = vpop.f32.mrb[0].mxu0
    %v538 = vadd.f32 %v112, %v537
    %539 = vmatprep.mubr.f32.mxu0 0.0
    %540 = vmatmul.mubr.f32.gmra.mrb[0].mxu0 %v223
    %v541 = vpop.f32.mrb[0].mxu0
    %v542 = vadd.f32 %v113, %v541
    %v543 = vpop.f32.mrb[0].mxu0
    %v544 = vadd.f32 %v113, %v543
    %545 = vmatprep.mubr.f32.mxu0 0.0
    %546 = vmatmul.mubr.f32.gmra.mrb[0].mxu0 %v226
    %v547 = vpop.f32.mrb[0].mxu0
    %v548 = vadd.f32 %v114, %v547
    %v549 = vpop.f32.mrb[0].mxu0
    %v550 = vadd.f32 %v114, %v549
    %551 = vmatprep.mubr.f32.mxu0 0.0
    %552 = vmatmul.mubr.f32.gmra.mrb[0].mxu0 %v229
    %v553 = vpop.f32.mrb[0].mxu0
    %v554 = vadd.f32 %v115, %v553
    %v555 = vpop.f32.mrb[0].mxu0
    %v556 = vadd.f32 %v115, %v555
    %557 = vmatprep.mubr.f32.mxu0 0.0
    %558 = vmatmul.mubr.f32.gmra.mrb[0].mxu0 %v232
    %v559 = vpop.f32.mrb[0].mxu0
    %v560 = vadd.f32 %v116, %v559
    %v561 = vpop.f32.mrb[0].mxu0
    %v562 = vadd.f32 %v116, %v561
    %563 = vmatprep.mubr.f32.mxu0 0.0
    %564 = vmatmul.mubr.f32.gmra.mrb[0].mxu0 %v235
    %v565 = vpop.f32.mrb[0].mxu0
    %v566 = vadd.f32 %v117, %v565
    %v567 = vpop.f32.mrb[0].mxu0
    %v568 = vadd.f32 %v117, %v567
    %569 = vmatprep.mubr.f32.mxu0 0.0
    %570 = vmatmul.mubr.f32.gmra.mrb[0].mxu0 %v238
    %v571 = vpop.f32.mrb[0].mxu0
    %v572 = vadd.f32 %v118, %v571
    %v573 = vpop.f32.mrb[0].mxu0
    %v574 = vadd.f32 %v118, %v573
    %575 = vmatprep.mubr.f32.mxu0 0.0
    %576 = vmatmul.mubr.f32.gmra.mrb[0].mxu0 %v241
    %v577 = vpop.f32.mrb[0].mxu0
    %v578 = vadd.f32 %v119, %v577
    %v579 = vpop.f32.mrb[0].mxu0
    %v580 = vadd.f32 %v119, %v579
    %581 = vdwg.mxu0
    %582 = vmatprep.subr.mxu0 %v210
    %583 = vmatpush1.msra.mxu0 %v209
    %584 = vmatprep.subr.mxu0 %v218
    %585 = vmatpush1.msra.mxu0 %v217
    %586 = vmatprep.subr.mxu0 0.0
    %587 = vmatpush1.msra.mxu0 0.0
    %588 = vmatprep.subr.mxu0 0.0
    %589 = vmatpush1.msra.mxu0 0.0
    %590 = vmatprep.subr.mxu0 0.0
    %591 = vmatpush1.msra.mxu0 0.0
    %592 = vmatprep.subr.mxu0 0.0
    %593 = vmatpush1.msra.mxu0 0.0
    %594 = vmatprep.subr.mxu0 0.0
    %595 = vmatpush1.msra.mxu0 0.0
    %596 = vmatprep.subr.mxu0 0.0
    %597 = vmatpush1.msra.mxu0 0.0
    %598 = vmatprep.subr.mxu0 0.0
    %599 = vmatpush1.msra.mxu0 0.0
    %600 = vmatprep.subr.mxu0 0.0
    %601 = vmatpush1.msra.mxu0 0.0
    %602 = vmatprep.subr.mxu0 0.0
    %603 = vmatpush1.msra.mxu0 0.0
    %604 = vmatprep.subr.mxu0 0.0
    %605 = vmatpush1.msra.mxu0 0.0
    %606 = vmatprep.subr.mxu0 0.0
    %607 = vmatpush1.msra.mxu0 0.0
    %608 = vmatprep.subr.mxu0 0.0
    %609 = vmatpush1.msra.mxu0 0.0
    %610 = vmatprep.subr.mxu0 0.0
    %611 = vmatpush1.msra.mxu0 0.0
    %612 = vmatprep.subr.mxu0 0.0
    %613 = vmatpush1.msra.mxu0 0.0
    %614 = vmatprep.subr.mxu0 0.0
    %615 = vmatpush1.msra.mxu0 0.0
    %616 = vmatprep.subr.mxu0 0.0
    %617 = vmatpush1.msra.mxu0 0.0
    %618 = vmatprep.subr.mxu0 0.0
    %619 = vmatpush1.msra.mxu0 0.0
    %620 = vmatprep.subr.mxu0 0.0
    %621 = vmatpush1.msra.mxu0 0.0
    %622 = vmatprep.subr.mxu0 0.0
    %623 = vmatpush1.msra.mxu0 0.0
    %624 = vmatprep.subr.mxu0 0.0
    %625 = vmatpush1.msra.mxu0 0.0
    %626 = vmatprep.subr.mxu0 0.0
    %627 = vmatpush1.msra.mxu0 0.0
    %628 = vmatprep.subr.mxu0 0.0
    %629 = vmatpush1.msra.mxu0 0.0
    %630 = vmatprep.subr.mxu0 0.0
    %631 = vmatpush1.msra.mxu0 0.0
    %632 = vmatprep.subr.mxu0 0.0
    %633 = vmatpush1.msra.mxu0 0.0
    %634 = vmatprep.subr.mxu0 0.0
    %635 = vmatpush1.msra.mxu0 0.0
    %636 = vmatprep.subr.mxu0 0.0
    %637 = vmatpush1.msra.mxu0 0.0
    %638 = vmatprep.subr.mxu0 0.0
    %639 = vmatpush1.msra.mxu0 0.0
    %640 = vmatprep.subr.mxu0 0.0
    %641 = vmatpush1.msra.mxu0 0.0
    %642 = vmatprep.subr.mxu0 0.0
    %643 = vmatpush1.msra.mxu0 0.0
    %644 = vmatprep.subr.mxu0 0.0
    %645 = vmatpush1.msra.mxu0 0.0
    %646 = vmatprep.mubr.f32.mxu0 0.0
    %647 = vmatmul.mubr.f32.gmra.mrb[0].mxu0 %v220
    %v648 = vpop.f32.mrb[0].mxu0
    %v649 = vadd.f32 %v112, %v648
    %v650 = vpop.f32.mrb[0].mxu0
    %v651 = vadd.f32 %v112, %v650
    %652 = vmatprep.mubr.f32.mxu0 0.0
    %653 = vmatmul.mubr.f32.gmra.mrb[0].mxu0 %v223
    %v654 = vpop.f32.mrb[0].mxu0
    %v655 = vadd.f32 %v113, %v654
    %v656 = vpop.f32.mrb[0].mxu0
    %v657 = vadd.f32 %v113, %v656
    %658 = vmatprep.mubr.f32.mxu0 0.0
    %659 = vmatmul.mubr.f32.gmra.mrb[0].mxu0 %v226
    %v660 = vpop.f32.mrb[0].mxu0
    %v661 = vadd.f32 %v114, %v660
    %v662 = vpop.f32.mrb[0].mxu0
    %v663 = vadd.f32 %v114, %v662
    %664 = vmatprep.mubr.f32.mxu0 0.0
    %665 = vmatmul.mubr.f32.gmra.mrb[0].mxu0 %v229
    %v666 = vpop.f32.mrb[0].mxu0
    %v667 = vadd.f32 %v115, %v666
    %v668 = vpop.f32.mrb[0].mxu0
    %v669 = vadd.f32 %v115, %v668
    %670 = vmatprep.mubr.f32.mxu0 0.0
    %671 = vmatmul.mubr.f32.gmra.mrb[0].mxu0 %v232
    %v672 = vpop.f32.mrb[0].mxu0
    %v673 = vadd.f32 %v116, %v672
    %v674 = vpop.f32.mrb[0].mxu0
    %v675 = vadd.f32 %v116, %v674
    %676 = vmatprep.mubr.f32.mxu0 0.0
    %677 = vmatmul.mubr.f32.gmra.mrb[0].mxu0 %v235
    %v678 = vpop.f32.mrb[0].mxu0
    %v679 = vadd.f32 %v117, %v678
    %v680 = vpop.f32.mrb[0].mxu0
    %v681 = vadd.f32 %v117, %v680
    %682 = vmatprep.mubr.f32.mxu0 0.0
    %683 = vmatmul.mubr.f32.gmra.mrb[0].mxu0 %v238
    %v684 = vpop.f32.mrb[0].mxu0
    %v685 = vadd.f32 %v118, %v684
    %v686 = vpop.f32.mrb[0].mxu0
    %v687 = vadd.f32 %v118, %v686
    %688 = vmatprep.mubr.f32.mxu0 0.0
    %689 = vmatmul.mubr.f32.gmra.mrb[0].mxu0 %v241
    %v690 = vpop.f32.mrb[0].mxu0
    %v691 = vadd.f32 %v119, %v690
    %v692 = vpop.f32.mrb[0].mxu0
    %v693 = vadd.f32 %v119, %v692
    %694 = vdwg.mxu0
    %v695 = vadd.f32 %v310, %v194
    %v696 = vadd.f32 %v312, %v195
    %v697 = vadd.f32 %v423, %v196
    %v698 = vadd.f32 %v425, %v197
    %v699 = vadd.f32 %v536, %v198
    %v700 = vadd.f32 %v538, %v199
    %v701 = vadd.f32 %v649, %v200
    %v702 = vadd.f32 %v651, %v201
    %v703 = vadd.f32 %v316, %v194
    %v704 = vadd.f32 %v318, %v195
    %v705 = vadd.f32 %v429, %v196
    %v706 = vadd.f32 %v431, %v197
    %v707 = vadd.f32 %v542, %v198
    %v708 = vadd.f32 %v544, %v199
    %v709 = vadd.f32 %v655, %v200
    %v710 = vadd.f32 %v657, %v201
    %v711 = vadd.f32 %v322, %v194
    %v712 = vadd.f32 %v324, %v195
    %v713 = vadd.f32 %v435, %v196
    %v714 = vadd.f32 %v437, %v197
    %v715 = vadd.f32 %v548, %v198
    %v716 = vadd.f32 %v550, %v199
    %v717 = vadd.f32 %v661, %v200
    %v718 = vadd.f32 %v663, %v201
    %v719 = vadd.f32 %v328, %v194
    %v720 = vadd.f32 %v330, %v195
    %v721 = vadd.f32 %v441, %v196
    %v722 = vadd.f32 %v443, %v197
    %v723 = vadd.f32 %v554, %v198
    %v724 = vadd.f32 %v556, %v199
    %v725 = vadd.f32 %v667, %v200
    %v726 = vadd.f32 %v669, %v201
    %v727 = vadd.f32 %v334, %v194
    %v728 = vadd.f32 %v336, %v195
    %v729 = vadd.f32 %v447, %v196
    %v730 = vadd.f32 %v449, %v197
    %v731 = vadd.f32 %v560, %v198
    %v732 = vadd.f32 %v562, %v199
    %v733 = vadd.f32 %v673, %v200
    %v734 = vadd.f32 %v675, %v201
    %v735 = vadd.f32 %v340, %v194
    %v736 = vadd.f32 %v342, %v195
    %v737 = vadd.f32 %v453, %v196
    %v738 = vadd.f32 %v455, %v197
    %v739 = vadd.f32 %v566, %v198
    %v740 = vadd.f32 %v568, %v199
    %v741 = vadd.f32 %v679, %v200
    %v742 = vadd.f32 %v681, %v201
    %v743 = vadd.f32 %v346, %v194
    %v744 = vadd.f32 %v348, %v195
    %v745 = vadd.f32 %v459, %v196
    %v746 = vadd.f32 %v461, %v197
    %v747 = vadd.f32 %v572, %v198
    %v748 = vadd.f32 %v574, %v199
    %v749 = vadd.f32 %v685, %v200
    %v750 = vadd.f32 %v687, %v201
    %v751 = vadd.f32 %v352, %v194
    %v752 = vadd.f32 %v354, %v195
    %v753 = vadd.f32 %v465, %v196
    %v754 = vadd.f32 %v467, %v197
    %v755 = vadd.f32 %v578, %v198
    %v756 = vadd.f32 %v580, %v199
    %v757 = vadd.f32 %v691, %v200
    %v758 = vadd.f32 %v693, %v201
    %v759 = vmul.f32 %v695, 1.442695
    %v760 = vpow.pop %v759
    %v761 = vmul.f32 %v696, 1.442695
    %v762 = vpow.pop %v761
    %v763 = vmul.f32 %v697, 1.442695
    %v764 = vpow.pop %v763
    %v765 = vmul.f32 %v698, 1.442695
    %v766 = vpow.pop %v765
    %v767 = vmul.f32 %v699, 1.442695
    %v768 = vpow.pop %v767
    %v769 = vmul.f32 %v700, 1.442695
    %v770 = vpow.pop %v769
    %v771 = vmul.f32 %v701, 1.442695
    %v772 = vpow.pop %v771
    %v773 = vmul.f32 %v702, 1.442695
    %v774 = vpow.pop %v773
    %v775 = vmul.f32 %v703, 1.442695
    %v776 = vpow.pop %v775
    %v777 = vmul.f32 %v704, 1.442695
    %v778 = vpow.pop %v777
    %v779 = vmul.f32 %v705, 1.442695
    %v780 = vpow.pop %v779
    %v781 = vmul.f32 %v706, 1.442695
    %v782 = vpow.pop %v781
    %v783 = vmul.f32 %v707, 1.442695
    %v784 = vpow.pop %v783
    %v785 = vmul.f32 %v708, 1.442695
    %v786 = vpow.pop %v785
    %v787 = vmul.f32 %v709, 1.442695
    %v788 = vpow.pop %v787
    %v789 = vmul.f32 %v710, 1.442695
    %v790 = vpow.pop %v789
    %v791 = vmul.f32 %v711, 1.442695
    %v792 = vpow.pop %v791
    %v793 = vmul.f32 %v712, 1.442695
    %v794 = vpow.pop %v793
    %v795 = vmul.f32 %v713, 1.442695
    %v796 = vpow.pop %v795
    %v797 = vmul.f32 %v714, 1.442695
    %v798 = vpow.pop %v797
    %v799 = vmul.f32 %v715, 1.442695
    %v800 = vpow.pop %v799
    %v801 = vmul.f32 %v716, 1.442695
    %v802 = vpow.pop %v801
    %v803 = vmul.f32 %v717, 1.442695
    %v804 = vpow.pop %v803
    %v805 = vmul.f32 %v718, 1.442695
    %v806 = vpow.pop %v805
    %v807 = vmul.f32 %v719, 1.442695
    %v808 = vpow.pop %v807
    %v809 = vmul.f32 %v720, 1.442695
    %v810 = vpow.pop %v809
    %v811 = vmul.f32 %v721, 1.442695
    %v812 = vpow.pop %v811
    %v813 = vmul.f32 %v722, 1.442695
    %v814 = vpow.pop %v813
    %v815 = vmul.f32 %v723, 1.442695
    %v816 = vpow.pop %v815
    %v817 = vmul.f32 %v724, 1.442695
    %v818 = vpow.pop %v817
    %v819 = vmul.f32 %v725, 1.442695
    %v820 = vpow.pop %v819
    %v821 = vmul.f32 %v726, 1.442695
    %v822 = vpow.pop %v821
    %v823 = vmul.f32 %v727, 1.442695
    %v824 = vpow.pop %v823
    %v825 = vmul.f32 %v728, 1.442695
    %v826 = vpow.pop %v825
    %v827 = vmul.f32 %v729, 1.442695
    %v828 = vpow.pop %v827
    %v829 = vmul.f32 %v730, 1.442695
    %v830 = vpow.pop %v829
    %v831 = vmul.f32 %v731, 1.442695
    %v832 = vpow.pop %v831
    %v833 = vmul.f32 %v732, 1.442695
    %v834 = vpow.pop %v833
    %v835 = vmul.f32 %v733, 1.442695
    %v836 = vpow.pop %v835
    %v837 = vmul.f32 %v734, 1.442695
    %v838 = vpow.pop %v837
    %v839 = vmul.f32 %v735, 1.442695
    %v840 = vpow.pop %v839
    %v841 = vmul.f32 %v736, 1.442695
    %v842 = vpow.pop %v841
    %v843 = vmul.f32 %v737, 1.442695
    %v844 = vpow.pop %v843
    %v845 = vmul.f32 %v738, 1.442695
    %v846 = vpow.pop %v845
    %v847 = vmul.f32 %v739, 1.442695
    %v848 = vpow.pop %v847
    %v849 = vmul.f32 %v740, 1.442695
    %v850 = vpow.pop %v849
    %v851 = vmul.f32 %v741, 1.442695
    %v852 = vpow.pop %v851
    %v853 = vmul.f32 %v742, 1.442695
    %v854 = vpow.pop %v853
    %v855 = vmul.f32 %v743, 1.442695
    %v856 = vpow.pop %v855
    %v857 = vmul.f32 %v744, 1.442695
    %v858 = vpow.pop %v857
    %v859 = vmul.f32 %v745, 1.442695
    %v860 = vpow.pop %v859
    %v861 = vmul.f32 %v746, 1.442695
    %v862 = vpow.pop %v861
    %v863 = vmul.f32 %v747, 1.442695
    %v864 = vpow.pop %v863
    %v865 = vmul.f32 %v748, 1.442695
    %v866 = vpow.pop %v865
    %v867 = vmul.f32 %v749, 1.442695
    %v868 = vpow.pop %v867
    %v869 = vmul.f32 %v750, 1.442695
    %v870 = vpow.pop %v869
    %v871 = vmul.f32 %v751, 1.442695
    %v872 = vpow.pop %v871
    %v873 = vmul.f32 %v752, 1.442695
    %v874 = vpow.pop %v873
    %v875 = vmul.f32 %v753, 1.442695
    %v876 = vpow.pop %v875
    %v877 = vmul.f32 %v754, 1.442695
    %v878 = vpow.pop %v877
    %v879 = vmul.f32 %v755, 1.442695
    %v880 = vpow.pop %v879
    %v881 = vmul.f32 %v756, 1.442695
    %v882 = vpow.pop %v881
    %v883 = vmul.f32 %v757, 1.442695
    %v884 = vpow.pop %v883
    %v885 = vmul.f32 %v758, 1.442695
    %v886 = vpow.pop %v885
    %vm887 = vcmask 523264
    %v889 = vsel %vm887, %v59, 0
    %v892 = vsel %vm887, %v60, 0
    %v895 = vsel %vm887, %v61, 0
    %v898 = vsel %vm887, %v62, 0
    %v901 = vsel %vm887, %v63, 0
    %v904 = vsel %vm887, %v64, 0
    %v907 = vsel %vm887, %v65, 0
    %v910 = vsel %vm887, %v66, 0
    %v913 = vsel %vm887, %v67, 0
    %915 = vmatprep.subr.mxu0 %v762
    %916 = vmatpush1.msra.mxu0 %v760
    %917 = vmatprep.subr.mxu0 %v778
    %918 = vmatpush1.msra.mxu0 %v776
    %919 = vmatprep.subr.mxu0 %v794
    %920 = vmatpush1.msra.mxu0 %v792
    %921 = vmatprep.subr.mxu0 %v810
    %922 = vmatpush1.msra.mxu0 %v808
    %923 = vmatprep.subr.mxu0 %v826
    %924 = vmatpush1.msra.mxu0 %v824
    %925 = vmatprep.subr.mxu0 %v842
    %926 = vmatpush1.msra.mxu0 %v840
    %927 = vmatprep.subr.mxu0 %v858
    %928 = vmatpush1.msra.mxu0 %v856
    %929 = vmatprep.subr.mxu0 %v874
    %930 = vmatpush1.msra.mxu0 %v872
    %931 = vmatprep.subr.mxu0 0.0
    %932 = vmatpush1.msra.mxu0 0.0
    %933 = vmatprep.subr.mxu0 0.0
    %934 = vmatpush1.msra.mxu0 0.0
    %935 = vmatprep.subr.mxu0 0.0
    %936 = vmatpush1.msra.mxu0 0.0
    %937 = vmatprep.subr.mxu0 0.0
    %938 = vmatpush1.msra.mxu0 0.0
    %939 = vmatprep.subr.mxu0 0.0
    %940 = vmatpush1.msra.mxu0 0.0
    %941 = vmatprep.subr.mxu0 0.0
    %942 = vmatpush1.msra.mxu0 0.0
    %943 = vmatprep.subr.mxu0 0.0
    %944 = vmatpush1.msra.mxu0 0.0
    %945 = vmatprep.subr.mxu0 0.0
    %946 = vmatpush1.msra.mxu0 0.0
    %947 = vmatprep.subr.mxu0 0.0
    %948 = vmatpush1.msra.mxu0 0.0
    %949 = vmatprep.subr.mxu0 0.0
    %950 = vmatpush1.msra.mxu0 0.0
    %951 = vmatprep.subr.mxu0 0.0
    %952 = vmatpush1.msra.mxu0 0.0
    %953 = vmatprep.subr.mxu0 0.0
    %954 = vmatpush1.msra.mxu0 0.0
    %955 = vmatprep.subr.mxu0 0.0
    %956 = vmatpush1.msra.mxu0 0.0
    %957 = vmatprep.subr.mxu0 0.0
    %958 = vmatpush1.msra.mxu0 0.0
    %959 = vmatprep.subr.mxu0 0.0
    %960 = vmatpush1.msra.mxu0 0.0
    %961 = vmatprep.subr.mxu0 0.0
    %962 = vmatpush1.msra.mxu0 0.0
    %963 = vmatprep.subr.mxu0 0.0
    %964 = vmatpush1.msra.mxu0 0.0
    %965 = vmatprep.subr.mxu0 0.0
    %966 = vmatpush1.msra.mxu0 0.0
    %967 = vmatprep.subr.mxu0 0.0
    %968 = vmatpush1.msra.mxu0 0.0
    %969 = vmatprep.subr.mxu0 0.0
    %970 = vmatpush1.msra.mxu0 0.0
    %971 = vmatprep.subr.mxu0 0.0
    %972 = vmatpush1.msra.mxu0 0.0
    %973 = vmatprep.subr.mxu0 0.0
    %974 = vmatpush1.msra.mxu0 0.0
    %975 = vmatprep.subr.mxu0 0.0
    %976 = vmatpush1.msra.mxu0 0.0
    %977 = vmatprep.subr.mxu0 0.0
    %978 = vmatpush1.msra.mxu0 0.0
    %979 = vmatprep.mubr.f32.mxu0 0.0
    %980 = vmatmul.mubr.f32.gmra.mrb[0].mxu0 %v889
    %v981 = vpop.f32.mrb[0].mxu0
    %v982 = vadd.f32 0.0, %v981
    %v983 = vpop.f32.mrb[0].mxu0
    %v984 = vadd.f32 0.0, %v983
    %985 = vmatprep.mubr.f32.mxu0 0.0
    %986 = vmatmul.mubr.f32.gmra.mrb[0].mxu0 %v892
    %v987 = vpop.f32.mrb[0].mxu0
    %v988 = vadd.f32 0.0, %v987
    %v989 = vpop.f32.mrb[0].mxu0
    %v990 = vadd.f32 0.0, %v989
    %991 = vmatprep.mubr.f32.mxu0 0.0
    %992 = vmatmul.mubr.f32.gmra.mrb[0].mxu0 %v895
    %v993 = vpop.f32.mrb[0].mxu0
    %v994 = vadd.f32 0.0, %v993
    %v995 = vpop.f32.mrb[0].mxu0
    %v996 = vadd.f32 0.0, %v995
    %997 = vmatprep.mubr.f32.mxu0 0.0
    %998 = vmatmul.mubr.f32.gmra.mrb[0].mxu0 %v898
    %v999 = vpop.f32.mrb[0].mxu0
    %v1000 = vadd.f32 0.0, %v999
    %v1001 = vpop.f32.mrb[0].mxu0
    %v1002 = vadd.f32 0.0, %v1001
    %1003 = vmatprep.mubr.f32.mxu0 0.0
    %1004 = vmatmul.mubr.f32.gmra.mrb[0].mxu0 %v901
    %v1005 = vpop.f32.mrb[0].mxu0
    %v1006 = vadd.f32 0.0, %v1005
    %v1007 = vpop.f32.mrb[0].mxu0
    %v1008 = vadd.f32 0.0, %v1007
    %1009 = vmatprep.mubr.f32.mxu0 0.0
    %1010 = vmatmul.mubr.f32.gmra.mrb[0].mxu0 %v904
    %v1011 = vpop.f32.mrb[0].mxu0
    %v1012 = vadd.f32 0.0, %v1011
    %v1013 = vpop.f32.mrb[0].mxu0
    %v1014 = vadd.f32 0.0, %v1013
    %1015 = vmatprep.mubr.f32.mxu0 0.0
    %1016 = vmatmul.mubr.f32.gmra.mrb[0].mxu0 %v907
    %v1017 = vpop.f32.mrb[0].mxu0
    %v1018 = vadd.f32 0.0, %v1017
    %v1019 = vpop.f32.mrb[0].mxu0
    %v1020 = vadd.f32 0.0, %v1019
    %1021 = vmatprep.mubr.f32.mxu0 0.0
    %1022 = vmatmul.mubr.f32.gmra.mrb[0].mxu0 %v910
    %v1023 = vpop.f32.mrb[0].mxu0
    %v1024 = vadd.f32 0.0, %v1023
    %v1025 = vpop.f32.mrb[0].mxu0
    %v1026 = vadd.f32 0.0, %v1025
    %1027 = vmatprep.mubr.f32.mxu0 0.0
    %1028 = vmatmul.mubr.f32.gmra.mrb[0].mxu0 %v913
    %v1029 = vpop.f32.mrb[0].mxu0
    %v1030 = vadd.f32 0.0, %v1029
    %v1031 = vpop.f32.mrb[0].mxu0
    %v1032 = vadd.f32 0.0, %v1031
    %1033 = vdwg.mxu0
    %1034 = vmatprep.subr.mxu0 %v766
    %1035 = vmatpush1.msra.mxu0 %v764
    %1036 = vmatprep.subr.mxu0 %v782
    %1037 = vmatpush1.msra.mxu0 %v780
    %1038 = vmatprep.subr.mxu0 %v798
    %1039 = vmatpush1.msra.mxu0 %v796
    %1040 = vmatprep.subr.mxu0 %v814
    %1041 = vmatpush1.msra.mxu0 %v812
    %1042 = vmatprep.subr.mxu0 %v830
    %1043 = vmatpush1.msra.mxu0 %v828
    %1044 = vmatprep.subr.mxu0 %v846
    %1045 = vmatpush1.msra.mxu0 %v844
    %1046 = vmatprep.subr.mxu0 %v862
    %1047 = vmatpush1.msra.mxu0 %v860
    %1048 = vmatprep.subr.mxu0 %v878
    %1049 = vmatpush1.msra.mxu0 %v876
    %1050 = vmatprep.subr.mxu0 0.0
    %1051 = vmatpush1.msra.mxu0 0.0
    %1052 = vmatprep.subr.mxu0 0.0
    %1053 = vmatpush1.msra.mxu0 0.0
    %1054 = vmatprep.subr.mxu0 0.0
    %1055 = vmatpush1.msra.mxu0 0.0
    %1056 = vmatprep.subr.mxu0 0.0
    %1057 = vmatpush1.msra.mxu0 0.0
    %1058 = vmatprep.subr.mxu0 0.0
    %1059 = vmatpush1.msra.mxu0 0.0
    %1060 = vmatprep.subr.mxu0 0.0
    %1061 = vmatpush1.msra.mxu0 0.0
    %1062 = vmatprep.subr.mxu0 0.0
    %1063 = vmatpush1.msra.mxu0 0.0
    %1064 = vmatprep.subr.mxu0 0.0
    %1065 = vmatpush1.msra.mxu0 0.0
    %1066 = vmatprep.subr.mxu0 0.0
    %1067 = vmatpush1.msra.mxu0 0.0
    %1068 = vmatprep.subr.mxu0 0.0
    %1069 = vmatpush1.msra.mxu0 0.0
    %1070 = vmatprep.subr.mxu0 0.0
    %1071 = vmatpush1.msra.mxu0 0.0
    %1072 = vmatprep.subr.mxu0 0.0
    %1073 = vmatpush1.msra.mxu0 0.0
    %1074 = vmatprep.subr.mxu0 0.0
    %1075 = vmatpush1.msra.mxu0 0.0
    %1076 = vmatprep.subr.mxu0 0.0
    %1077 = vmatpush1.msra.mxu0 0.0
    %1078 = vmatprep.subr.mxu0 0.0
    %1079 = vmatpush1.msra.mxu0 0.0
    %1080 = vmatprep.subr.mxu0 0.0
    %1081 = vmatpush1.msra.mxu0 0.0
    %1082 = vmatprep.subr.mxu0 0.0
    %1083 = vmatpush1.msra.mxu0 0.0
    %1084 = vmatprep.subr.mxu0 0.0
    %1085 = vmatpush1.msra.mxu0 0.0
    %1086 = vmatprep.subr.mxu0 0.0
    %1087 = vmatpush1.msra.mxu0 0.0
    %1088 = vmatprep.subr.mxu0 0.0
    %1089 = vmatpush1.msra.mxu0 0.0
    %1090 = vmatprep.subr.mxu0 0.0
    %1091 = vmatpush1.msra.mxu0 0.0
    %1092 = vmatprep.subr.mxu0 0.0
    %1093 = vmatpush1.msra.mxu0 0.0
    %1094 = vmatprep.subr.mxu0 0.0
    %1095 = vmatpush1.msra.mxu0 0.0
    %1096 = vmatprep.subr.mxu0 0.0
    %1097 = vmatpush1.msra.mxu0 0.0
    %1098 = vmatprep.mubr.f32.mxu0 0.0
    %1099 = vmatmul.mubr.f32.gmra.mrb[0].mxu0 %v889
    %v1100 = vpop.f32.mrb[0].mxu0
    %v1101 = vadd.f32 0.0, %v1100
    %v1102 = vpop.f32.mrb[0].mxu0
    %v1103 = vadd.f32 0.0, %v1102
    %1104 = vmatprep.mubr.f32.mxu0 0.0
    %1105 = vmatmul.mubr.f32.gmra.mrb[0].mxu0 %v892
    %v1106 = vpop.f32.mrb[0].mxu0
    %v1107 = vadd.f32 0.0, %v1106
    %v1108 = vpop.f32.mrb[0].mxu0
    %v1109 = vadd.f32 0.0, %v1108
    %1110 = vmatprep.mubr.f32.mxu0 0.0
    %1111 = vmatmul.mubr.f32.gmra.mrb[0].mxu0 %v895
    %v1112 = vpop.f32.mrb[0].mxu0
    %v1113 = vadd.f32 0.0, %v1112
    %v1114 = vpop.f32.mrb[0].mxu0
    %v1115 = vadd.f32 0.0, %v1114
    %1116 = vmatprep.mubr.f32.mxu0 0.0
    %1117 = vmatmul.mubr.f32.gmra.mrb[0].mxu0 %v898
    %v1118 = vpop.f32.mrb[0].mxu0
    %v1119 = vadd.f32 0.0, %v1118
    %v1120 = vpop.f32.mrb[0].mxu0
    %v1121 = vadd.f32 0.0, %v1120
    %1122 = vmatprep.mubr.f32.mxu0 0.0
    %1123 = vmatmul.mubr.f32.gmra.mrb[0].mxu0 %v901
    %v1124 = vpop.f32.mrb[0].mxu0
    %v1125 = vadd.f32 0.0, %v1124
    %v1126 = vpop.f32.mrb[0].mxu0
    %v1127 = vadd.f32 0.0, %v1126
    %1128 = vmatprep.mubr.f32.mxu0 0.0
    %1129 = vmatmul.mubr.f32.gmra.mrb[0].mxu0 %v904
    %v1130 = vpop.f32.mrb[0].mxu0
    %v1131 = vadd.f32 0.0, %v1130
    %v1132 = vpop.f32.mrb[0].mxu0
    %v1133 = vadd.f32 0.0, %v1132
    %1134 = vmatprep.mubr.f32.mxu0 0.0
    %1135 = vmatmul.mubr.f32.gmra.mrb[0].mxu0 %v907
    %v1136 = vpop.f32.mrb[0].mxu0
    %v1137 = vadd.f32 0.0, %v1136
    %v1138 = vpop.f32.mrb[0].mxu0
    %v1139 = vadd.f32 0.0, %v1138
    %1140 = vmatprep.mubr.f32.mxu0 0.0
    %1141 = vmatmul.mubr.f32.gmra.mrb[0].mxu0 %v910
    %v1142 = vpop.f32.mrb[0].mxu0
    %v1143 = vadd.f32 0.0, %v1142
    %v1144 = vpop.f32.mrb[0].mxu0
    %v1145 = vadd.f32 0.0, %v1144
    %1146 = vmatprep.mubr.f32.mxu0 0.0
    %1147 = vmatmul.mubr.f32.gmra.mrb[0].mxu0 %v913
    %v1148 = vpop.f32.mrb[0].mxu0
    %v1149 = vadd.f32 0.0, %v1148
    %v1150 = vpop.f32.mrb[0].mxu0
    %v1151 = vadd.f32 0.0, %v1150
    %1152 = vdwg.mxu0
    %1153 = vmatprep.subr.mxu0 %v770
    %1154 = vmatpush1.msra.mxu0 %v768
    %1155 = vmatprep.subr.mxu0 %v786
    %1156 = vmatpush1.msra.mxu0 %v784
    %1157 = vmatprep.subr.mxu0 %v802
    %1158 = vmatpush1.msra.mxu0 %v800
    %1159 = vmatprep.subr.mxu0 %v818
    %1160 = vmatpush1.msra.mxu0 %v816
    %1161 = vmatprep.subr.mxu0 %v834
    %1162 = vmatpush1.msra.mxu0 %v832
    %1163 = vmatprep.subr.mxu0 %v850
    %1164 = vmatpush1.msra.mxu0 %v848
    %1165 = vmatprep.subr.mxu0 %v866
    %1166 = vmatpush1.msra.mxu0 %v864
    %1167 = vmatprep.subr.mxu0 %v882
    %1168 = vmatpush1.msra.mxu0 %v880
    %1169 = vmatprep.subr.mxu0 0.0
    %1170 = vmatpush1.msra.mxu0 0.0
    %1171 = vmatprep.subr.mxu0 0.0
    %1172 = vmatpush1.msra.mxu0 0.0
    %1173 = vmatprep.subr.mxu0 0.0
    %1174 = vmatpush1.msra.mxu0 0.0
    %1175 = vmatprep.subr.mxu0 0.0
    %1176 = vmatpush1.msra.mxu0 0.0
    %1177 = vmatprep.subr.mxu0 0.0
    %1178 = vmatpush1.msra.mxu0 0.0
    %1179 = vmatprep.subr.mxu0 0.0
    %1180 = vmatpush1.msra.mxu0 0.0
    %1181 = vmatprep.subr.mxu0 0.0
    %1182 = vmatpush1.msra.mxu0 0.0
    %1183 = vmatprep.subr.mxu0 0.0
    %1184 = vmatpush1.msra.mxu0 0.0
    %1185 = vmatprep.subr.mxu0 0.0
    %1186 = vmatpush1.msra.mxu0 0.0
    %1187 = vmatprep.subr.mxu0 0.0
    %1188 = vmatpush1.msra.mxu0 0.0
    %1189 = vmatprep.subr.mxu0 0.0
    %1190 = vmatpush1.msra.mxu0 0.0
    %1191 = vmatprep.subr.mxu0 0.0
    %1192 = vmatpush1.msra.mxu0 0.0
    %1193 = vmatprep.subr.mxu0 0.0
    %1194 = vmatpush1.msra.mxu0 0.0
    %1195 = vmatprep.subr.mxu0 0.0
    %1196 = vmatpush1.msra.mxu0 0.0
    %1197 = vmatprep.subr.mxu0 0.0
    %1198 = vmatpush1.msra.mxu0 0.0
    %1199 = vmatprep.subr.mxu0 0.0
    %1200 = vmatpush1.msra.mxu0 0.0
    %1201 = vmatprep.subr.mxu0 0.0
    %1202 = vmatpush1.msra.mxu0 0.0
    %1203 = vmatprep.subr.mxu0 0.0
    %1204 = vmatpush1.msra.mxu0 0.0
    %1205 = vmatprep.subr.mxu0 0.0
    %1206 = vmatpush1.msra.mxu0 0.0
    %1207 = vmatprep.subr.mxu0 0.0
    %1208 = vmatpush1.msra.mxu0 0.0
    %1209 = vmatprep.subr.mxu0 0.0
    %1210 = vmatpush1.msra.mxu0 0.0
    %1211 = vmatprep.subr.mxu0 0.0
    %1212 = vmatpush1.msra.mxu0 0.0
    %1213 = vmatprep.subr.mxu0 0.0
    %1214 = vmatpush1.msra.mxu0 0.0
    %1215 = vmatprep.subr.mxu0 0.0
    %1216 = vmatpush1.msra.mxu0 0.0
    %1217 = vmatprep.mubr.f32.mxu0 0.0
    %1218 = vmatmul.mubr.f32.gmra.mrb[0].mxu0 %v889
    %v1219 = vpop.f32.mrb[0].mxu0
    %v1220 = vadd.f32 0.0, %v1219
    %v1221 = vpop.f32.mrb[0].mxu0
    %v1222 = vadd.f32 0.0, %v1221
    %1223 = vmatprep.mubr.f32.mxu0 0.0
    %1224 = vmatmul.mubr.f32.gmra.mrb[0].mxu0 %v892
    %v1225 = vpop.f32.mrb[0].mxu0
    %v1226 = vadd.f32 0.0, %v1225
    %v1227 = vpop.f32.mrb[0].mxu0
    %v1228 = vadd.f32 0.0, %v1227
    %1229 = vmatprep.mubr.f32.mxu0 0.0
    %1230 = vmatmul.mubr.f32.gmra.mrb[0].mxu0 %v895
    %v1231 = vpop.f32.mrb[0].mxu0
    %v1232 = vadd.f32 0.0, %v1231
    %v1233 = vpop.f32.mrb[0].mxu0
    %v1234 = vadd.f32 0.0, %v1233
    %1235 = vmatprep.mubr.f32.mxu0 0.0
    %1236 = vmatmul.mubr.f32.gmra.mrb[0].mxu0 %v898
    %v1237 = vpop.f32.mrb[0].mxu0
    %v1238 = vadd.f32 0.0, %v1237
    %v1239 = vpop.f32.mrb[0].mxu0
    %v1240 = vadd.f32 0.0, %v1239
    %1241 = vmatprep.mubr.f32.mxu0 0.0
    %1242 = vmatmul.mubr.f32.gmra.mrb[0].mxu0 %v901
    %v1243 = vpop.f32.mrb[0].mxu0
    %v1244 = vadd.f32 0.0, %v1243
    %v1245 = vpop.f32.mrb[0].mxu0
    %v1246 = vadd.f32 0.0, %v1245
    %1247 = vmatprep.mubr.f32.mxu0 0.0
    %1248 = vmatmul.mubr.f32.gmra.mrb[0].mxu0 %v904
    %v1249 = vpop.f32.mrb[0].mxu0
    %v1250 = vadd.f32 0.0, %v1249
    %v1251 = vpop.f32.mrb[0].mxu0
    %v1252 = vadd.f32 0.0, %v1251
    %1253 = vmatprep.mubr.f32.mxu0 0.0
    %1254 = vmatmul.mubr.f32.gmra.mrb[0].mxu0 %v907
    %v1255 = vpop.f32.mrb[0].mxu0
    %v1256 = vadd.f32 0.0, %v1255
    %v1257 = vpop.f32.mrb[0].mxu0
    %v1258 = vadd.f32 0.0, %v1257
    %1259 = vmatprep.mubr.f32.mxu0 0.0
    %1260 = vmatmul.mubr.f32.gmra.mrb[0].mxu0 %v910
    %v1261 = vpop.f32.mrb[0].mxu0
    %v1262 = vadd.f32 0.0, %v1261
    %v1263 = vpop.f32.mrb[0].mxu0
    %v1264 = vadd.f32 0.0, %v1263
    %1265 = vmatprep.mubr.f32.mxu0 0.0
    %1266 = vmatmul.mubr.f32.gmra.mrb[0].mxu0 %v913
    %v1267 = vpop.f32.mrb[0].mxu0
    %v1268 = vadd.f32 0.0, %v1267
    %v1269 = vpop.f32.mrb[0].mxu0
    %v1270 = vadd.f32 0.0, %v1269
    %1271 = vdwg.mxu0
    %1272 = vmatprep.subr.mxu0 %v774
    %1273 = vmatpush1.msra.mxu0 %v772
    %1274 = vmatprep.subr.mxu0 %v790
    %1275 = vmatpush1.msra.mxu0 %v788
    %1276 = vmatprep.subr.mxu0 %v806
    %1277 = vmatpush1.msra.mxu0 %v804
    %1278 = vmatprep.subr.mxu0 %v822
    %1279 = vmatpush1.msra.mxu0 %v820
    %1280 = vmatprep.subr.mxu0 %v838
    %1281 = vmatpush1.msra.mxu0 %v836
    %1282 = vmatprep.subr.mxu0 %v854
    %1283 = vmatpush1.msra.mxu0 %v852
    %1284 = vmatprep.subr.mxu0 %v870
    %1285 = vmatpush1.msra.mxu0 %v868
    %1286 = vmatprep.subr.mxu0 %v886
    %1287 = vmatpush1.msra.mxu0 %v884
    %1288 = vmatprep.subr.mxu0 0.0
    %1289 = vmatpush1.msra.mxu0 0.0
    %1290 = vmatprep.subr.mxu0 0.0
    %1291 = vmatpush1.msra.mxu0 0.0
    %1292 = vmatprep.subr.mxu0 0.0
    %1293 = vmatpush1.msra.mxu0 0.0
    %1294 = vmatprep.subr.mxu0 0.0
    %1295 = vmatpush1.msra.mxu0 0.0
    %1296 = vmatprep.subr.mxu0 0.0
    %1297 = vmatpush1.msra.mxu0 0.0
    %1298 = vmatprep.subr.mxu0 0.0
    %1299 = vmatpush1.msra.mxu0 0.0
    %1300 = vmatprep.subr.mxu0 0.0
    %1301 = vmatpush1.msra.mxu0 0.0
    %1302 = vmatprep.subr.mxu0 0.0
    %1303 = vmatpush1.msra.mxu0 0.0
    %1304 = vmatprep.subr.mxu0 0.0
    %1305 = vmatpush1.msra.mxu0 0.0
    %1306 = vmatprep.subr.mxu0 0.0
    %1307 = vmatpush1.msra.mxu0 0.0
    %1308 = vmatprep.subr.mxu0 0.0
    %1309 = vmatpush1.msra.mxu0 0.0
    %1310 = vmatprep.subr.mxu0 0.0
    %1311 = vmatpush1.msra.mxu0 0.0
    %1312 = vmatprep.subr.mxu0 0.0
    %1313 = vmatpush1.msra.mxu0 0.0
    %1314 = vmatprep.subr.mxu0 0.0
    %1315 = vmatpush1.msra.mxu0 0.0
    %1316 = vmatprep.subr.mxu0 0.0
    %1317 = vmatpush1.msra.mxu0 0.0
    %1318 = vmatprep.subr.mxu0 0.0
    %1319 = vmatpush1.msra.mxu0 0.0
    %1320 = vmatprep.subr.mxu0 0.0
    %1321 = vmatpush1.msra.mxu0 0.0
    %1322 = vmatprep.subr.mxu0 0.0
    %1323 = vmatpush1.msra.mxu0 0.0
    %1324 = vmatprep.subr.mxu0 0.0
    %1325 = vmatpush1.msra.mxu0 0.0
    %1326 = vmatprep.subr.mxu0 0.0
    %1327 = vmatpush1.msra.mxu0 0.0
    %1328 = vmatprep.subr.mxu0 0.0
    %1329 = vmatpush1.msra.mxu0 0.0
    %1330 = vmatprep.subr.mxu0 0.0
    %1331 = vmatpush1.msra.mxu0 0.0
    %1332 = vmatprep.subr.mxu0 0.0
    %1333 = vmatpush1.msra.mxu0 0.0
    %1334 = vmatprep.subr.mxu0 0.0
    %1335 = vmatpush1.msra.mxu0 0.0
    %1336 = vmatprep.mubr.f32.mxu0 0.0
    %1337 = vmatmul.mubr.f32.gmra.mrb[0].mxu0 %v889
    %v1338 = vpop.f32.mrb[0].mxu0
    %v1339 = vadd.f32 0.0, %v1338
    %v1340 = vpop.f32.mrb[0].mxu0
    %v1341 = vadd.f32 0.0, %v1340
    %1342 = vmatprep.mubr.f32.mxu0 0.0
    %1343 = vmatmul.mubr.f32.gmra.mrb[0].mxu0 %v892
    %v1344 = vpop.f32.mrb[0].mxu0
    %v1345 = vadd.f32 0.0, %v1344
    %v1346 = vpop.f32.mrb[0].mxu0
    %v1347 = vadd.f32 0.0, %v1346
    %1348 = vmatprep.mubr.f32.mxu0 0.0
    %1349 = vmatmul.mubr.f32.gmra.mrb[0].mxu0 %v895
    %v1350 = vpop.f32.mrb[0].mxu0
    %v1351 = vadd.f32 0.0, %v1350
    %v1352 = vpop.f32.mrb[0].mxu0
    %v1353 = vadd.f32 0.0, %v1352
    %1354 = vmatprep.mubr.f32.mxu0 0.0
    %1355 = vmatmul.mubr.f32.gmra.mrb[0].mxu0 %v898
    %v1356 = vpop.f32.mrb[0].mxu0
    %v1357 = vadd.f32 0.0, %v1356
    %v1358 = vpop.f32.mrb[0].mxu0
    %v1359 = vadd.f32 0.0, %v1358
    %1360 = vmatprep.mubr.f32.mxu0 0.0
    %1361 = vmatmul.mubr.f32.gmra.mrb[0].mxu0 %v901
    %v1362 = vpop.f32.mrb[0].mxu0
    %v1363 = vadd.f32 0.0, %v1362
    %v1364 = vpop.f32.mrb[0].mxu0
    %v1365 = vadd.f32 0.0, %v1364
    %1366 = vmatprep.mubr.f32.mxu0 0.0
    %1367 = vmatmul.mubr.f32.gmra.mrb[0].mxu0 %v904
    %v1368 = vpop.f32.mrb[0].mxu0
    %v1369 = vadd.f32 0.0, %v1368
    %v1370 = vpop.f32.mrb[0].mxu0
    %v1371 = vadd.f32 0.0, %v1370
    %1372 = vmatprep.mubr.f32.mxu0 0.0
    %1373 = vmatmul.mubr.f32.gmra.mrb[0].mxu0 %v907
    %v1374 = vpop.f32.mrb[0].mxu0
    %v1375 = vadd.f32 0.0, %v1374
    %v1376 = vpop.f32.mrb[0].mxu0
    %v1377 = vadd.f32 0.0, %v1376
    %1378 = vmatprep.mubr.f32.mxu0 0.0
    %1379 = vmatmul.mubr.f32.gmra.mrb[0].mxu0 %v910
    %v1380 = vpop.f32.mrb[0].mxu0
    %v1381 = vadd.f32 0.0, %v1380
    %v1382 = vpop.f32.mrb[0].mxu0
    %v1383 = vadd.f32 0.0, %v1382
    %1384 = vmatprep.mubr.f32.mxu0 0.0
    %1385 = vmatmul.mubr.f32.gmra.mrb[0].mxu0 %v913
    %v1386 = vpop.f32.mrb[0].mxu0
    %v1387 = vadd.f32 0.0, %v1386
    %v1388 = vpop.f32.mrb[0].mxu0
    %v1389 = vadd.f32 0.0, %v1388
    %1390 = vdwg.mxu0
    %v1391 = vmul.f32 %v760, %v982
    %v1392 = vmul.f32 %v762, %v984
    %v1393 = vmul.f32 %v764, %v1101
    %v1394 = vmul.f32 %v766, %v1103
    %v1395 = vmul.f32 %v768, %v1220
    %v1396 = vmul.f32 %v770, %v1222
    %v1397 = vmul.f32 %v772, %v1339
    %v1398 = vmul.f32 %v774, %v1341
    %v1399 = vmul.f32 %v776, %v988
    %v1400 = vmul.f32 %v778, %v990
    %v1401 = vmul.f32 %v780, %v1107
    %v1402 = vmul.f32 %v782, %v1109
    %v1403 = vmul.f32 %v784, %v1226
    %v1404 = vmul.f32 %v786, %v1228
    %v1405 = vmul.f32 %v788, %v1345
    %v1406 = vmul.f32 %v790, %v1347
    %v1407 = vmul.f32 %v792, %v994
    %v1408 = vmul.f32 %v794, %v996
    %v1409 = vmul.f32 %v796, %v1113
    %v1410 = vmul.f32 %v798, %v1115
    %v1411 = vmul.f32 %v800, %v1232
    %v1412 = vmul.f32 %v802, %v1234
    %v1413 = vmul.f32 %v804, %v1351
    %v1414 = vmul.f32 %v806, %v1353
    %v1415 = vmul.f32 %v808, %v1000
    %v1416 = vmul.f32 %v810, %v1002
    %v1417 = vmul.f32 %v812, %v1119
    %v1418 = vmul.f32 %v814, %v1121
    %v1419 = vmul.f32 %v816, %v1238
    %v1420 = vmul.f32 %v818, %v1240
    %v1421 = vmul.f32 %v820, %v1357
    %v1422 = vmul.f32 %v822, %v1359
    %v1423 = vmul.f32 %v824, %v1006
    %v1424 = vmul.f32 %v826, %v1008
    %v1425 = vmul.f32 %v828, %v1125
    %v1426 = vmul.f32 %v830, %v1127
    %v1427 = vmul.f32 %v832, %v1244
    %v1428 = vmul.f32 %v834, %v1246
    %v1429 = vmul.f32 %v836, %v1363
    %v1430 = vmul.f32 %v838, %v1365
    %v1431 = vmul.f32 %v840, %v1012
    %v1432 = vmul.f32 %v842, %v1014
    %v1433 = vmul.f32 %v844, %v1131
    %v1434 = vmul.f32 %v846, %v1133
    %v1435 = vmul.f32 %v848, %v1250
    %v1436 = vmul.f32 %v850, %v1252
    %v1437 = vmul.f32 %v852, %v1369
    %v1438 = vmul.f32 %v854, %v1371
    %v1439 = vmul.f32 %v856, %v1018
    %v1440 = vmul.f32 %v858, %v1020
    %v1441 = vmul.f32 %v860, %v1137
    %v1442 = vmul.f32 %v862, %v1139
    %v1443 = vmul.f32 %v864, %v1256
    %v1444 = vmul.f32 %v866, %v1258
    %v1445 = vmul.f32 %v868, %v1375
    %v1446 = vmul.f32 %v870, %v1377
    %v1447 = vmul.f32 %v872, %v1024
    %v1448 = vmul.f32 %v874, %v1026
    %v1449 = vmul.f32 %v876, %v1143
    %v1450 = vmul.f32 %v878, %v1145
    %v1451 = vmul.f32 %v880, %v1262
    %v1452 = vmul.f32 %v882, %v1264
    %v1453 = vmul.f32 %v884, %v1381
    %v1454 = vmul.f32 %v886, %v1383
    %v1455 = vadd.f32 %v1391, %v1399
    %v1456 = vadd.f32 %v1455, %v1407
    %v1457 = vadd.f32 %v1456, %v1415
    %v1458 = vadd.f32 %v1457, %v1423
    %v1459 = vadd.f32 %v1458, %v1431
    %v1460 = vadd.f32 %v1459, %v1439
    %v1461 = vadd.f32 %v1460, %v1447
    %v1462 = vrot.slane %v1461, 4
    %v1463 = vadd.f32 %v1461, %v1462
    %v1464 = vrot.slane %v1463, 2
    %v1465 = vadd.f32 %v1463, %v1464
    %v1466 = vrot.slane %v1465, 1
    %v1467 = vadd.f32 %v1465, %v1466
    %v1468 = vadd.f32 %v1392, %v1400
    %v1469 = vadd.f32 %v1468, %v1408
    %v1470 = vadd.f32 %v1469, %v1416
    %v1471 = vadd.f32 %v1470, %v1424
    %v1472 = vadd.f32 %v1471, %v1432
    %v1473 = vadd.f32 %v1472, %v1440
    %v1474 = vadd.f32 %v1473, %v1448
    %v1475 = vrot.slane %v1474, 4
    %v1476 = vadd.f32 %v1474, %v1475
    %v1477 = vrot.slane %v1476, 2
    %v1478 = vadd.f32 %v1476, %v1477
    %v1479 = vrot.slane %v1478, 1
    %v1480 = vadd.f32 %v1478, %v1479
    %v1481 = vadd.f32 %v1393, %v1401
    %v1482 = vadd.f32 %v1481, %v1409
    %v1483 = vadd.f32 %v1482, %v1417
    %v1484 = vadd.f32 %v1483, %v1425
    %v1485 = vadd.f32 %v1484, %v1433
    %v1486 = vadd.f32 %v1485, %v1441
    %v1487 = vadd.f32 %v1486, %v1449
    %v1488 = vrot.slane %v1487, 4
    %v1489 = vadd.f32 %v1487, %v1488
    %v1490 = vrot.slane %v1489, 2
    %v1491 = vadd.f32 %v1489, %v1490
    %v1492 = vrot.slane %v1491, 1
    %v1493 = vadd.f32 %v1491, %v1492
    %v1494 = vadd.f32 %v1394, %v1402
    %v1495 = vadd.f32 %v1494, %v1410
    %v1496 = vadd.f32 %v1495, %v1418
    %v1497 = vadd.f32 %v1496, %v1426
    %v1498 = vadd.f32 %v1497, %v1434
    %v1499 = vadd.f32 %v1498, %v1442
    %v1500 = vadd.f32 %v1499, %v1450
    %v1501 = vrot.slane %v1500, 4
    %v1502 = vadd.f32 %v1500, %v1501
    %v1503 = vrot.slane %v1502, 2
    %v1504 = vadd.f32 %v1502, %v1503
    %v1505 = vrot.slane %v1504, 1
    %v1506 = vadd.f32 %v1504, %v1505
    %v1507 = vadd.f32 %v1395, %v1403
    %v1508 = vadd.f32 %v1507, %v1411
    %v1509 = vadd.f32 %v1508, %v1419
    %v1510 = vadd.f32 %v1509, %v1427
    %v1511 = vadd.f32 %v1510, %v1435
    %v1512 = vadd.f32 %v1511, %v1443
    %v1513 = vadd.f32 %v1512, %v1451
    %v1514 = vrot.slane %v1513, 4
    %v1515 = vadd.f32 %v1513, %v1514
    %v1516 = vrot.slane %v1515, 2
    %v1517 = vadd.f32 %v1515, %v1516
    %v1518 = vrot.slane %v1517, 1
    %v1519 = vadd.f32 %v1517, %v1518
    %v1520 = vadd.f32 %v1396, %v1404
    %v1521 = vadd.f32 %v1520, %v1412
    %v1522 = vadd.f32 %v1521, %v1420
    %v1523 = vadd.f32 %v1522, %v1428
    %v1524 = vadd.f32 %v1523, %v1436
    %v1525 = vadd.f32 %v1524, %v1444
    %v1526 = vadd.f32 %v1525, %v1452
    %v1527 = vrot.slane %v1526, 4
    %v1528 = vadd.f32 %v1526, %v1527
    %v1529 = vrot.slane %v1528, 2
    %v1530 = vadd.f32 %v1528, %v1529
    %v1531 = vrot.slane %v1530, 1
    %v1532 = vadd.f32 %v1530, %v1531
    %v1533 = vadd.f32 %v1397, %v1405
    %v1534 = vadd.f32 %v1533, %v1413
    %v1535 = vadd.f32 %v1534, %v1421
    %v1536 = vadd.f32 %v1535, %v1429
    %v1537 = vadd.f32 %v1536, %v1437
    %v1538 = vadd.f32 %v1537, %v1445
    %v1539 = vadd.f32 %v1538, %v1453
    %v1540 = vrot.slane %v1539, 4
    %v1541 = vadd.f32 %v1539, %v1540
    %v1542 = vrot.slane %v1541, 2
    %v1543 = vadd.f32 %v1541, %v1542
    %v1544 = vrot.slane %v1543, 1
    %v1545 = vadd.f32 %v1543, %v1544
    %v1546 = vadd.f32 %v1398, %v1406
    %v1547 = vadd.f32 %v1546, %v1414
    %v1548 = vadd.f32 %v1547, %v1422
    %v1549 = vadd.f32 %v1548, %v1430
    %v1550 = vadd.f32 %v1549, %v1438
    %v1551 = vadd.f32 %v1550, %v1446
    %v1552 = vadd.f32 %v1551, %v1454
    %v1553 = vrot.slane %v1552, 4
    %v1554 = vadd.f32 %v1552, %v1553
    %v1555 = vrot.slane %v1554, 2
    %v1556 = vadd.f32 %v1554, %v1555
    %v1557 = vrot.slane %v1556, 1
    %v1558 = vadd.f32 %v1556, %v1557
    %1559 = vst [vmem:[#allocation2] sm:$0x1] %v1030
    %1560 = vst [vmem:[#allocation3] sm:$0x1] %v1467
    %1561 = vst [vmem:[#allocation2 + $0x1] sm:$0x1] %v1032
    %1562 = vst [vmem:[#allocation3 + $0x1] sm:$0x1] %v1480
    %1563 = vst [vmem:[#allocation2 + $0x2] sm:$0x1] %v1149
    %1564 = vst [vmem:[#allocation3 + $0x2] sm:$0x1] %v1493
    %1565 = vst [vmem:[#allocation2 + $0x3] sm:$0x1] %v1151
    %1566 = vst [vmem:[#allocation3 + $0x3] sm:$0x1] %v1506
    %1567 = vst [vmem:[#allocation2 + $0x4] sm:$0x1] %v1268
    %1568 = vst [vmem:[#allocation3 + $0x4] sm:$0x1] %v1519
    %1569 = vst [vmem:[#allocation2 + $0x5] sm:$0x1] %v1270
    %1570 = vst [vmem:[#allocation3 + $0x5] sm:$0x1] %v1532
    %1571 = vst [vmem:[#allocation2 + $0x6] sm:$0x1] %v1387
    %1572 = vst [vmem:[#allocation3 + $0x6] sm:$0x1] %v1545
    %1573 = vst [vmem:[#allocation2 + $0x7] sm:$0x1] %v1389
    %1574 = vst [vmem:[#allocation3 + $0x7] sm:$0x1] %v1558
    %v1575 = vld [vmem:[#allocation2] sm:$0xff]
    %v1576 = vld [vmem:[#allocation3] sm:$0xff]
    %v1577 = vstv %s33
    %v1578 = vsub.f32 %v1577, %v1576
    %v1579 = vmax.f32 %v1578, 1e-12
    %v1580 = vmul.f32 %v1579, 1.4142135
    %v1581 = vrcp.pop %v1580
    %v1582 = vstv %s34
    %v1583 = vsub.f32 %v1582, %v1575
    %v1584 = vmul.f32 %v1583, %v1581
    %v1585 = verf.f32.pop %v1584
    %v1586 = vadd.f32 %v1585, 1.0
    %v1587 = vmul.f32 %v1586, 0.5
    %v1588 = vsub.f32 1.0, %v1587
    %v1589 = vsub.f32 1.0, %v1588
    %v1590 = vsub.f32 0.0, %v1588
    %v1591 = vmax.f32 %v1588, 1e-38
    %v1592 = vlog2.pop %v1591
    %v1593 = vmul.f32 %v1592, 0.6931472
    %v1594 = vmul.f32 %v1590, %v1593
    %v1595 = vmax.f32 %v1589, 1e-38
    %v1596 = vlog2.pop %v1595
    %v1597 = vmul.f32 %v1596, 0.6931472
    %v1598 = vmul.f32 %v1589, %v1597
    %v1599 = vsub.f32 %v1594, %v1598
    %vm1600 = vcmp.le.f32.partialorder %v1588, 0.0
    %vm1601 = vcmp.ge.f32.partialorder %v1588, 1.0
    %vm1602 = vmor %vm1600, %vm1601
    %v1603 = vsel %vm1602, 0.0, %v1599
    %1604 = vst [vmem:[#allocation7] sm:$0xff] %v1603
    // Predicated region
    $region22: #{tpu_custom_call.1} parent=1 // pred_check
      _
    $region23: #{tpu_custom_call.1} parent=1 // pred_check_branch
      %1606 = sbr.rel (0) target = $region25
    $region24: #{tpu_custom_call.1} parent=1 // pred_region
      %s1608 = ssub.s32 128, 128
      %1609 = vsyncadd [#allocation5], %s1608
      %s1611 = sshll.u32 [#allocation7], 4
      %s1612 = int_to_ptr.vmem [resolvable:$true] %s1611
      %1614 = dma.vmem_to_hbm [thread:$0]  %s1612, 128, %s4, [#allocation5]
    $region25: #{tpu_custom_call.1} parent=1 // pred_fallthru
      _
    // Predicated region
    $region26: #{tpu_custom_call.1} parent=1 // pred_check
      _
    $region27: #{tpu_custom_call.1} parent=1 // pred_check_branch
      %1616 = sbr.rel (0) target = $region29
    $region28: #{tpu_custom_call.1} parent=1 // pred_region
      %1617 = dma.done [#allocation5], 128
    $region29: #{tpu_custom_call.1} parent=1 // pred_fallthru
      _
    %1618 = vsyncpa [#allocation5], 1
    %1619 = vsyncpa [#allocation6], 1

</llo_original>
